<compile_context>
chip_gen: v7x
topology: tpu7x:2x2x1
jax: 0.10.0
libtpu: 0.0.40
codegen_flags: <defaults>
</compile_context>

<pallas_src>
import math
import jax
import jax.numpy as jnp
from jax.experimental import pallas as pl
from jax.experimental.pallas import tpu as pltpu

# ---------------- hyperparameters (small but structurally faithful) ------------
MIN_DEG_POINT = 0
MAX_DEG_POINT = 4
DEG_VIEW = 2
INPUT_CH = 3
INPUT_CH_VIEW = 3
NETDEPTH = 8
NETWIDTH = 32
NETDEPTH_COND = 1
NETWIDTH_COND = 32
SKIP_LAYER = 4
NUM_RGB = 3
NUM_DENSITY = 1

POS_SIZE = ((MAX_DEG_POINT - MIN_DEG_POINT) * 2 + 1) * INPUT_CH        # 27
VIEW_POS_SIZE = (DEG_VIEW * 2 + 1) * INPUT_CH_VIEW                     # 15

POS_PAD = ((POS_SIZE + 7) // 8) * 8                                    # 32 (sublane aligned)
OUT_WIDTH = 2 * NUM_RGB + NUM_DENSITY                                  # 7  (rgb1|rgb2|density)
OUT_PAD = 8                                                            # fused head rows (padded)
DENSITY_ROW = 2 * NUM_RGB                                              # density at head row 6
BD_ROWS = NETWIDTH + OUT_PAD                                           # 40: bottleneck + aligned tail
CAT_ROWS = NETWIDTH + POS_PAD                                          # 64: skip-concat scratch rows

# trunk layers (1..NETDEPTH-1) whose input is the skip-concatenated positional features
SKIP_INPUT_LAYERS = tuple(
    idx for idx in range(1, NETDEPTH) if (idx - 1) % SKIP_LAYER == 0 and (idx - 1) > 0
)  # -> (5,) with the defaults
HAS_SKIP = len(SKIP_INPUT_LAYERS) > 0

# the weight stacking below assumes the padded positional width equals netwidth
assert POS_PAD == NETWIDTH


# ------------------------------ parameter init ---------------------------------
def _xavier_uniform(key, fan_in, fan_out):
    a = math.sqrt(6.0 / (fan_in + fan_out))
    return jax.random.uniform(key, (fan_in, fan_out), jnp.float32, -a, a)


def _bias(key, fan_in, fan_out):
    bound = 1.0 / math.sqrt(fan_in)
    return jax.random.uniform(key, (1, fan_out), jnp.float32, -bound, bound)


def init_params(key):
    """Weights stored as (in, out) so x @ W + b matches torch's x @ W.T + b."""
    keys = iter(jax.random.split(key, 64))
    params = {}

    pts = []
    pts.append((_xavier_uniform(next(keys), POS_SIZE, NETWIDTH),
                _bias(next(keys), POS_SIZE, NETWIDTH)))
    for idx in range(NETDEPTH - 1):
        if idx % SKIP_LAYER == 0 and idx > 0:
            fan_in = NETWIDTH + POS_SIZE
        else:
            fan_in = NETWIDTH
        pts.append((_xavier_uniform(next(keys), fan_in, NETWIDTH),
                    _bias(next(keys), fan_in, NETWIDTH)))
    params["pts"] = pts

    views = [(_xavier_uniform(next(keys), NETWIDTH + VIEW_POS_SIZE, NETWIDTH_COND),
              _bias(next(keys), NETWIDTH + VIEW_POS_SIZE, NETWIDTH_COND))]
    for _ in range(NETDEPTH_COND - 1):
        views.append((_xavier_uniform(next(keys), NETWIDTH_COND, NETWIDTH_COND),
                      _bias(next(keys), NETWIDTH_COND, NETWIDTH_COND)))
    params["views"] = views

    params["bottleneck"] = (_xavier_uniform(next(keys), NETWIDTH, NETWIDTH),
                            _bias(next(keys), NETWIDTH, NETWIDTH))
    params["density"] = (_xavier_uniform(next(keys), NETWIDTH, NUM_DENSITY),
                         _bias(next(keys), NETWIDTH, NUM_DENSITY))
    params["rgb1"] = (_xavier_uniform(next(keys), NETWIDTH_COND, NUM_RGB),
                      _bias(next(keys), NETWIDTH_COND, NUM_RGB))
    params["rgb2"] = (_xavier_uniform(next(keys), NETWIDTH_COND, NUM_RGB),
                      _bias(next(keys), NETWIDTH_COND, NUM_RGB))
    return params


# --------------------------------- kernel --------------------------------------
def nerf_mlp_kernel(*refs):
    """Transposed layout: every activation is (features, tile_samples)."""
    it = iter(refs)
    x_ref = next(it)                               # (POS_PAD, ts)          compute dtype
    cond_ref = next(it)                            # (NWC, 1) or (NWC, ts)  act dtype
    w_trunk_ref = next(it)                         # (NETDEPTH, NW, NW)     compute dtype
    b_trunk_ref = next(it)                         # (NETDEPTH, NW, 1)      act dtype
    w_skip_ref = next(it) if HAS_SKIP else None    # (n_skip, NW, CAT_ROWS) compute dtype
    w_bd_ref = next(it)                            # (BD_ROWS, NW)          compute dtype
    b_bd_ref = next(it)                            # (BD_ROWS, 1)           f32
    w_view_ref = next(it)                          # (NDC, NWC, NW)         compute dtype
    b_view_ref = next(it)                          # (NDC, NWC, 1)          act dtype
    w_out_ref = next(it)                           # (OUT_PAD, NWC)         compute dtype
    b_out_ref = next(it)                           # (OUT_PAD, 1)           f32
    out_ref = next(it)                             # (OUT_PAD, ts)          f32
    cat_ref = next(it) if HAS_SKIP else None       # (CAT_ROWS, ts) scratch, compute dtype

    cd = x_ref.dtype                               # MXU operand dtype
    ad = b_trunk_ref.dtype                         # elementwise (bias + ReLU) dtype

    def mm(w, a, out_dtype):
        # f32 MXU accumulation; a single down-convert of the result (safe on all gens).
        return jnp.dot(w, a, preferred_element_type=jnp.float32).astype(out_dtype)

    # ---- pts trunk (x read at its use sites; not kept live across the trunk) ----
    h = jnp.maximum(mm(w_trunk_ref[0], x_ref[...], ad) + b_trunk_ref[0], 0.0)
    skip_i = 0
    for idx in range(1, NETDEPTH):
        if idx in SKIP_INPUT_LAYERS:
            # cat([h, inputs]) staged into VMEM -> one 64-contraction matmul.
            cat_ref[0:NETWIDTH, :] = h.astype(cd)
            cat_ref[NETWIDTH:, :] = x_ref[...]
            z = mm(w_skip_ref[skip_i], cat_ref[...], ad) + b_trunk_ref[idx]
            skip_i += 1
        else:
            z = mm(w_trunk_ref[idx], h.astype(cd), ad) + b_trunk_ref[idx]
        h = jnp.maximum(z, 0.0)

    # ---- fused bottleneck + density (kept in f32; density is precision sensitive) ----
    bd = mm(w_bd_ref[...], h.astype(cd), jnp.float32) + b_bd_ref[...]   # (BD_ROWS, ts)
    hv = bd[0:NETWIDTH, :].astype(cd)          # bottleneck (no activation)
    tail = bd[NETWIDTH:, :]                    # (OUT_PAD, ts) f32, density already at row 6

    # ---- view conditioning ----
    for li in range(NETDEPTH_COND):
        z = mm(w_view_ref[li], hv, ad) + b_view_ref[li]
        if li == 0:
            z = z + cond_ref[...]              # folded cond part of cat([bottleneck, cond]) @ W
        hv = jnp.maximum(z, 0.0).astype(cd)

    # ---- fused rgb head + density pass-through: one matmul, one lane-dense f32 store ----
    out_ref[...] = mm(w_out_ref[...], hv, jnp.float32) + b_out_ref[...] + tail


# --------------------------------- wrapper --------------------------------------
def _round_up(v, m):
    return ((v + m - 1) // m) * m


def nerf_mlp_forward(x, condition, params, *, tile_s=2048,
                     compute_dtype=jnp.bfloat16, act_dtype=None,
                     flatten_samples=None):
    """rgb1, rgb2, density = forward(x:(B,S,27), condition:(B,15)).

    compute_dtype : MXU operand dtype (bf16 recommended; float32 for exact semantics).
    act_dtype     : dtype of the bias-add/ReLU chain; defaults to compute_dtype.
                    On v5e (no bf16 VPU) pass act_dtype=jnp.float32.
    flatten_samples : flatten B*S onto the lane axis (auto when S < 128) so small
                    per-batch sample counts still fill 128-wide lane tiles.
    """
    B, S, feat = x.shape
    assert feat == POS_SIZE
    cd = compute_dtype
    ad = cd if act_dtype is None else act_dtype
    flatten = (S < 128) if flatten_samples is None else flatten_samples

    # ---- per-batch view-condition projection (exact fold of cat([bottleneck, cond]) @ Wv0) ----
    wv0, _ = params["views"][0]
    cond_proj = jnp.dot(condition.astype(cd), wv0[NETWIDTH:, :].astype(cd),
                        preferred_element_type=jnp.float32)            # (B, NWC)

    if flatten:
        Bk, Sk = 1, B * S
        x_k = x.reshape(1, B * S, POS_SIZE)
        cond_cols = jnp.repeat(cond_proj, S, axis=0).T[None, :, :]     # (1, NWC, B*S)
    else:
        Bk, Sk = B, S
        x_k = x
        cond_cols = cond_proj[:, :, None]                              # (B, NWC, 1)

    # ---- tile sizing (lane axis = samples), tail handled by zero padding ----
    ts = min(_round_up(tile_s, 128), _round_up(max(Sk, 1), 128))
    S_pad = _round_up(Sk, ts)
    n_s_tiles = S_pad // ts

    # ---- layout plumbing: (Bk, Sk, 27) -> (Bk, POS_PAD, S_pad), features on sublanes ----
    # TODO(synk): accept x pre-transposed as (B, F, S) from the producer to skip this HBM pass.
    x_t = jnp.transpose(x_k, (0, 2, 1)).astype(cd)
    x_t = jnp.pad(x_t, ((0, 0), (0, POS_PAD - POS_SIZE), (0, S_pad - Sk)))

    if flatten:
        cond_cols = jnp.pad(cond_cols, ((0, 0), (0, 0), (0, S_pad - Sk))).astype(ad)
        cond_spec = pl.BlockSpec((None, NETWIDTH_COND, ts), lambda b, s: (b, 0, s))
    else:
        cond_cols = cond_cols.astype(ad)
        cond_spec = pl.BlockSpec((None, NETWIDTH_COND, 1), lambda b, s: (b, 0, 0))

    # ---- weights: transpose to (out, in) and pack into a few stacked arrays ----
    def w_t(w, pad_in=None):
        wt = jnp.transpose(w)                          # (out, in), f32
        if pad_in is not None and wt.shape[1] < pad_in:
            wt = jnp.pad(wt, ((0, 0), (0, pad_in - wt.shape[1])))
        return wt

    trunk_w, trunk_b, skip_w = [], [], []
    w0, b0 = params["pts"][0]
    trunk_w.append(w_t(w0, POS_PAD))
    trunk_b.append(b0.T)
    for idx in range(1, NETDEPTH):
        w, b = params["pts"][idx]
        trunk_b.append(b.T)
        if idx in SKIP_INPUT_LAYERS:
            # pre-concatenated (out, NW + POS_PAD) weight: [W_h | W_x_padded]
            skip_w.append(jnp.concatenate(
                [w_t(w[:NETWIDTH, :]), w_t(w[NETWIDTH:, :], POS_PAD)], axis=1))
            trunk_w.append(jnp.zeros((NETWIDTH, NETWIDTH), jnp.float32))  # unused slot
        else:
            trunk_w.append(w_t(w))
    w_trunk = jnp.stack(trunk_w).astype(cd)            # (NETDEPTH, 32, 32)
    b_trunk = jnp.stack(trunk_b).astype(ad)            # (NETDEPTH, 32, 1)
    w_skip = jnp.stack(skip_w).astype(cd) if HAS_SKIP else None  # (n_skip, 32, 64)

    # fused bottleneck + density: one (40, 32) matmul; density lands at tail row DENSITY_ROW
    wb, bb = params["bottleneck"]
    wd, bd = params["density"]
    w_bd = jnp.zeros((BD_ROWS, NETWIDTH), jnp.float32)
    w_bd = w_bd.at[:NETWIDTH, :].set(wb.T)
    w_bd = w_bd.at[NETWIDTH + DENSITY_ROW:NETWIDTH + DENSITY_ROW + NUM_DENSITY, :].set(wd.T)
    b_bd = jnp.zeros((BD_ROWS, 1), jnp.float32)
    b_bd = b_bd.at[:NETWIDTH, :].set(bb.T)
    b_bd = b_bd.at[NETWIDTH + DENSITY_ROW:NETWIDTH + DENSITY_ROW + NUM_DENSITY, :].set(bd.T)
    w_bd = w_bd.astype(cd)                             # biases stay f32

    view_w, view_b = [], []
    for li, (wv, bv) in enumerate(params["views"]):
        view_b.append(bv.T)
        view_w.append(w_t(wv[:NETWIDTH, :]) if li == 0 else w_t(wv))
    w_view = jnp.stack(view_w).astype(cd)              # (NETDEPTH_COND, 32, 32)
    b_view = jnp.stack(view_b).astype(ad)              # (NETDEPTH_COND, 32, 1)

    wr1, br1 = params["rgb1"]
    wr2, br2 = params["rgb2"]
    w_out = jnp.zeros((OUT_PAD, NETWIDTH_COND), jnp.float32)
    w_out = w_out.at[0:NUM_RGB, :].set(wr1.T).at[NUM_RGB:2 * NUM_RGB, :].set(wr2.T)
    b_out = jnp.zeros((OUT_PAD, 1), jnp.float32)
    b_out = b_out.at[0:NUM_RGB, :].set(br1.T).at[NUM_RGB:2 * NUM_RGB, :].set(br2.T)
    w_out = w_out.astype(cd)

    weight_args = [w_trunk, b_trunk] + ([w_skip] if HAS_SKIP else []) \
        + [w_bd, b_bd, w_view, b_view, w_out, b_out]

    def full_spec(a):
        nd = a.ndim
        return pl.BlockSpec(a.shape, lambda b, s: (0,) * nd)

    x_spec = pl.BlockSpec((None, POS_PAD, ts), lambda b, s: (b, 0, s))
    out_spec = pl.BlockSpec((None, OUT_PAD, ts), lambda b, s: (b, 0, s))
    scratch = [pltpu.VMEM((CAT_ROWS, ts), cd)] if HAS_SKIP else []

    out_t = pl.pallas_call(
        nerf_mlp_kernel,
        out_shape=jax.ShapeDtypeStruct((Bk, OUT_PAD, S_pad), jnp.float32),
        grid_spec=pltpu.PrefetchScalarGridSpec(
            num_scalar_prefetch=0,
            grid=(Bk, n_s_tiles),
            in_specs=[x_spec, cond_spec] + [full_spec(a) for a in weight_args],
            out_specs=out_spec,
            scratch_shapes=scratch,
        ),
        compiler_params=pltpu.CompilerParams(
            # both axes parallel: shards across the 2 TensorCores on v7x when grid >= 2 steps
            dimension_semantics=("parallel", "parallel"),
            vmem_limit_bytes=32 * 1024 * 1024,
        ),
    )(x_t, cond_cols, *weight_args)

    out = jnp.transpose(out_t[:, :, :Sk], (0, 2, 1)).reshape(B, S, OUT_PAD)
    rgb1 = out[..., 0:NUM_RGB]
    rgb2 = out[..., NUM_RGB:2 * NUM_RGB]
    density = out[..., DENSITY_ROW:DENSITY_ROW + NUM_DENSITY]
    return rgb1, rgb2, density


# ------------------------------ pure-JAX reference ------------------------------
def nerf_mlp_ref(x, condition, params):
    def mm(a, w):
        return jnp.dot(a.astype(jnp.float32), w.astype(jnp.float32),
                       preferred_element_type=jnp.float32)

    B, S, feat = x.shape
    xf = x.reshape(-1, feat)
    inputs = xf
    h = xf
    for idx in range(NETDEPTH):
        w, b = params["pts"][idx]
        h = jnp.maximum(mm(h, w) + b, 0.0)
        if idx % SKIP_LAYER == 0 and idx > 0:
            h = jnp.concatenate([h, inputs], axis=-1)
    wd, bd = params["density"]
    dens = (mm(h, wd) + bd).reshape(B, S, NUM_DENSITY)
    wb, bb = params["bottleneck"]
    bott = mm(h, wb) + bb
    cond_tile = jnp.broadcast_to(
        condition[:, None, :], (B, S, VIEW_POS_SIZE)).reshape(B * S, VIEW_POS_SIZE)
    hv = jnp.concatenate([bott, cond_tile], axis=-1)
    for w, b in params["views"]:
        hv = jnp.maximum(mm(hv, w) + b, 0.0)
    w1, b1 = params["rgb1"]
    w2, b2 = params["rgb2"]
    rgb1 = (mm(hv, w1) + b1).reshape(B, S, NUM_RGB)
    rgb2 = (mm(hv, w2) + b2).reshape(B, S, NUM_RGB)
    return rgb1, rgb2, dens


# ----------------------------------- main ---------------------------------------
if __name__ == "__main__":
    key = jax.random.PRNGKey(0)
    k_param, k_x, k_c = jax.random.split(key, 3)

    B, S = 2, 8
    params = init_params(k_param)
    x = jax.random.normal(k_x, (B, S, POS_SIZE), jnp.float32)
    condition = jax.random.normal(k_c, (B, VIEW_POS_SIZE), jnp.float32)

    r1, r2, rd = nerf_mlp_ref(x, condition, params)

    # Strict f32 mode (flattened small-S path): must match the PyTorch-equivalent reference.
    rgb1_f, rgb2_f, dens_f = nerf_mlp_forward(
        x, condition, params, compute_dtype=jnp.float32, act_dtype=jnp.float32)
    jax.block_until_ready((rgb1_f, rgb2_f, dens_f))
    assert rgb1_f.shape == (B, S, NUM_RGB)
    assert rgb2_f.shape == (B, S, NUM_RGB)
    assert dens_f.shape == (B, S, NUM_DENSITY)
    assert jnp.allclose(rgb1_f, r1, atol=1e-4, rtol=1e-4)
    assert jnp.allclose(rgb2_f, r2, atol=1e-4, rtol=1e-4)
    assert jnp.allclose(dens_f, rd, atol=1e-4, rtol=1e-4)

    # Default fast path: bf16 MXU operands + bf16 elementwise (v6e/v7x).
    # (On v5e pass act_dtype=jnp.float32: no bf16 VPU there.)
    rgb1, rgb2, dens = nerf_mlp_forward(x, condition, params)
    jax.block_until_ready((rgb1, rgb2, dens))
    assert jnp.allclose(rgb1, r1, atol=1e-1, rtol=1e-1)
    assert jnp.allclose(rgb2, r2, atol=1e-1, rtol=1e-1)
    assert jnp.allclose(dens, rd, atol=1e-1, rtol=1e-1)

    # Exercise the per-batch (large-S, non-flattened) path as well.
    S2 = 256
    x2 = jax.random.normal(k_x, (B, S2, POS_SIZE), jnp.float32)
    rr1, rr2, rrd = nerf_mlp_ref(x2, condition, params)
    pr1, pr2, prd = nerf_mlp_forward(x2, condition, params,
                                     compute_dtype=jnp.float32, act_dtype=jnp.float32)
    jax.block_until_ready((pr1, pr2, prd))
    assert jnp.allclose(pr1, rr1, atol=1e-4, rtol=1e-4)
    assert jnp.allclose(pr2, rr2, atol=1e-4, rtol=1e-4)
    assert jnp.allclose(prd, rrd, atol=1e-4, rtol=1e-4)

    print("KERNEL_OK")
</pallas_src>

<mosaic_0001>
module attributes {stable_mosaic.version = 11 : i64} {
  func.func @nerf_mlp_kernel(%arg0: i32, %arg1: i32, %arg2: memref<1x32x128xf32, #tpu.memory_space<vmem>>, %arg3: memref<1x32x128xf32, #tpu.memory_space<vmem>>, %arg4: memref<8x32x32xf32, #tpu.memory_space<vmem>>, %arg5: memref<8x32x1xf32, #tpu.memory_space<vmem>>, %arg6: memref<1x32x64xf32, #tpu.memory_space<vmem>>, %arg7: memref<40x32xf32, #tpu.memory_space<vmem>>, %arg8: memref<40x1xf32, #tpu.memory_space<vmem>>, %arg9: memref<1x32x32xf32, #tpu.memory_space<vmem>>, %arg10: memref<1x32x1xf32, #tpu.memory_space<vmem>>, %arg11: memref<8x32xf32, #tpu.memory_space<vmem>>, %arg12: memref<8x1xf32, #tpu.memory_space<vmem>>, %arg13: memref<1x8x128xf32, #tpu.memory_space<vmem>>, %arg14: memref<64x128xf32, #tpu.memory_space<vmem>>) attributes {dimension_semantics = [#tpu.dimension_semantics<parallel>, #tpu.dimension_semantics<parallel>], iteration_bounds = array<i64: 1, 1>, scalar_prefetch = 0 : i64, scratch_operands = 1 : i64, tpu.core_type = #tpu.core_type<tc>, window_params = [{transform_indices = @transform_0, window_bounds = array<i64: 1, 32, 128>}, {transform_indices = @transform_1, window_bounds = array<i64: 1, 32, 128>}, {pipeline_mode = #tpu.pipeline_mode<synchronous>, transform_indices = @transform_2, window_bounds = array<i64: 8, 32, 32>}, {pipeline_mode = #tpu.pipeline_mode<synchronous>, transform_indices = @transform_3, window_bounds = array<i64: 8, 32, 1>}, {pipeline_mode = #tpu.pipeline_mode<synchronous>, transform_indices = @transform_4, window_bounds = array<i64: 1, 32, 64>}, {pipeline_mode = #tpu.pipeline_mode<synchronous>, transform_indices = @transform_5, window_bounds = array<i64: 40, 32>}, {pipeline_mode = #tpu.pipeline_mode<synchronous>, transform_indices = @transform_6, window_bounds = array<i64: 40, 1>}, {pipeline_mode = #tpu.pipeline_mode<synchronous>, transform_indices = @transform_7, window_bounds = array<i64: 1, 32, 32>}, {pipeline_mode = #tpu.pipeline_mode<synchronous>, transform_indices = @transform_8, window_bounds = array<i64: 1, 32, 1>}, {pipeline_mode = #tpu.pipeline_mode<synchronous>, transform_indices = @transform_9, window_bounds = array<i64: 8, 32>}, {pipeline_mode = #tpu.pipeline_mode<synchronous>, transform_indices = @transform_10, window_bounds = array<i64: 8, 1>}, {transform_indices = @transform_11, window_bounds = array<i64: 1, 8, 128>}]} {
    %c0 = arith.constant 0 : index
    %c0_0 = arith.constant 0 : index
    %c0_1 = arith.constant 0 : index
    %0 = vector.load %arg4[%c0, %c0_0, %c0_1] : memref<8x32x32xf32, #tpu.memory_space<vmem>>, vector<1x32x32xf32>
    %1 = vector.shape_cast %0 : vector<1x32x32xf32> to vector<32x32xf32>
    %c0_2 = arith.constant 0 : index
    %c0_3 = arith.constant 0 : index
    %c0_4 = arith.constant 0 : index
    %2 = vector.load %arg2[%c0_2, %c0_3, %c0_4] : memref<1x32x128xf32, #tpu.memory_space<vmem>>, vector<1x32x128xf32>
    %3 = vector.shape_cast %2 : vector<1x32x128xf32> to vector<32x128xf32>
    %cst = arith.constant dense<0.000000e+00> : vector<32x128xf32>
    %4 = tpu.matmul %1, %3, %cst {dimension_numbers = #tpu.dot_dimension_numbers<[1], [0], [0], [1], [0, 0, 1, 1], [], []>} : vector<32x32xf32>, vector<32x128xf32>, vector<32x128xf32> -> vector<32x128xf32>
    %c0_5 = arith.constant 0 : index
    %c0_6 = arith.constant 0 : index
    %c0_7 = arith.constant 0 : index
    %5 = vector.load %arg5[%c0_5, %c0_6, %c0_7] : memref<8x32x1xf32, #tpu.memory_space<vmem>>, vector<1x32x1xf32>
    %6 = vector.shape_cast %5 : vector<1x32x1xf32> to vector<32x1xf32>
    %7 = vector.broadcast %6 : vector<32x1xf32> to vector<32x128xf32>
    %8 = arith.addf %4, %7 : vector<32x128xf32>
    %cst_8 = arith.constant 0.000000e+00 : f32
    %9 = vector.broadcast %cst_8 : f32 to vector<32x128xf32>
    %10 = arith.maximumf %8, %9 : vector<32x128xf32>
    %c1 = arith.constant 1 : index
    %c0_9 = arith.constant 0 : index
    %c0_10 = arith.constant 0 : index
    %11 = vector.load %arg4[%c1, %c0_9, %c0_10] : memref<8x32x32xf32, #tpu.memory_space<vmem>>, vector<1x32x32xf32>
    %12 = vector.shape_cast %11 : vector<1x32x32xf32> to vector<32x32xf32>
    %cst_11 = arith.constant dense<0.000000e+00> : vector<32x128xf32>
    %13 = tpu.matmul %12, %10, %cst_11 {dimension_numbers = #tpu.dot_dimension_numbers<[1], [0], [0], [1], [0, 0, 1, 1], [], []>} : vector<32x32xf32>, vector<32x128xf32>, vector<32x128xf32> -> vector<32x128xf32>
    %c1_12 = arith.constant 1 : index
    %c0_13 = arith.constant 0 : index
    %c0_14 = arith.constant 0 : index
    %14 = vector.load %arg5[%c1_12, %c0_13, %c0_14] : memref<8x32x1xf32, #tpu.memory_space<vmem>>, vector<1x32x1xf32>
    %15 = vector.shape_cast %14 : vector<1x32x1xf32> to vector<32x1xf32>
    %16 = vector.broadcast %15 : vector<32x1xf32> to vector<32x128xf32>
    %17 = arith.addf %13, %16 : vector<32x128xf32>
    %cst_15 = arith.constant 0.000000e+00 : f32
    %18 = vector.broadcast %cst_15 : f32 to vector<32x128xf32>
    %19 = arith.maximumf %17, %18 : vector<32x128xf32>
    %c2 = arith.constant 2 : index
    %c0_16 = arith.constant 0 : index
    %c0_17 = arith.constant 0 : index
    %20 = vector.load %arg4[%c2, %c0_16, %c0_17] : memref<8x32x32xf32, #tpu.memory_space<vmem>>, vector<1x32x32xf32>
    %21 = vector.shape_cast %20 : vector<1x32x32xf32> to vector<32x32xf32>
    %cst_18 = arith.constant dense<0.000000e+00> : vector<32x128xf32>
    %22 = tpu.matmul %21, %19, %cst_18 {dimension_numbers = #tpu.dot_dimension_numbers<[1], [0], [0], [1], [0, 0, 1, 1], [], []>} : vector<32x32xf32>, vector<32x128xf32>, vector<32x128xf32> -> vector<32x128xf32>
    %c2_19 = arith.constant 2 : index
    %c0_20 = arith.constant 0 : index
    %c0_21 = arith.constant 0 : index
    %23 = vector.load %arg5[%c2_19, %c0_20, %c0_21] : memref<8x32x1xf32, #tpu.memory_space<vmem>>, vector<1x32x1xf32>
    %24 = vector.shape_cast %23 : vector<1x32x1xf32> to vector<32x1xf32>
    %25 = vector.broadcast %24 : vector<32x1xf32> to vector<32x128xf32>
    %26 = arith.addf %22, %25 : vector<32x128xf32>
    %cst_22 = arith.constant 0.000000e+00 : f32
    %27 = vector.broadcast %cst_22 : f32 to vector<32x128xf32>
    %28 = arith.maximumf %26, %27 : vector<32x128xf32>
    %c3 = arith.constant 3 : index
    %c0_23 = arith.constant 0 : index
    %c0_24 = arith.constant 0 : index
    %29 = vector.load %arg4[%c3, %c0_23, %c0_24] : memref<8x32x32xf32, #tpu.memory_space<vmem>>, vector<1x32x32xf32>
    %30 = vector.shape_cast %29 : vector<1x32x32xf32> to vector<32x32xf32>
    %cst_25 = arith.constant dense<0.000000e+00> : vector<32x128xf32>
    %31 = tpu.matmul %30, %28, %cst_25 {dimension_numbers = #tpu.dot_dimension_numbers<[1], [0], [0], [1], [0, 0, 1, 1], [], []>} : vector<32x32xf32>, vector<32x128xf32>, vector<32x128xf32> -> vector<32x128xf32>
    %c3_26 = arith.constant 3 : index
    %c0_27 = arith.constant 0 : index
    %c0_28 = arith.constant 0 : index
    %32 = vector.load %arg5[%c3_26, %c0_27, %c0_28] : memref<8x32x1xf32, #tpu.memory_space<vmem>>, vector<1x32x1xf32>
    %33 = vector.shape_cast %32 : vector<1x32x1xf32> to vector<32x1xf32>
    %34 = vector.broadcast %33 : vector<32x1xf32> to vector<32x128xf32>
    %35 = arith.addf %31, %34 : vector<32x128xf32>
    %cst_29 = arith.constant 0.000000e+00 : f32
    %36 = vector.broadcast %cst_29 : f32 to vector<32x128xf32>
    %37 = arith.maximumf %35, %36 : vector<32x128xf32>
    %c4 = arith.constant 4 : index
    %c0_30 = arith.constant 0 : index
    %c0_31 = arith.constant 0 : index
    %38 = vector.load %arg4[%c4, %c0_30, %c0_31] : memref<8x32x32xf32, #tpu.memory_space<vmem>>, vector<1x32x32xf32>
    %39 = vector.shape_cast %38 : vector<1x32x32xf32> to vector<32x32xf32>
    %cst_32 = arith.constant dense<0.000000e+00> : vector<32x128xf32>
    %40 = tpu.matmul %39, %37, %cst_32 {dimension_numbers = #tpu.dot_dimension_numbers<[1], [0], [0], [1], [0, 0, 1, 1], [], []>} : vector<32x32xf32>, vector<32x128xf32>, vector<32x128xf32> -> vector<32x128xf32>
    %c4_33 = arith.constant 4 : index
    %c0_34 = arith.constant 0 : index
    %c0_35 = arith.constant 0 : index
    %41 = vector.load %arg5[%c4_33, %c0_34, %c0_35] : memref<8x32x1xf32, #tpu.memory_space<vmem>>, vector<1x32x1xf32>
    %42 = vector.shape_cast %41 : vector<1x32x1xf32> to vector<32x1xf32>
    %43 = vector.broadcast %42 : vector<32x1xf32> to vector<32x128xf32>
    %44 = arith.addf %40, %43 : vector<32x128xf32>
    %cst_36 = arith.constant 0.000000e+00 : f32
    %45 = vector.broadcast %cst_36 : f32 to vector<32x128xf32>
    %46 = arith.maximumf %44, %45 : vector<32x128xf32>
    %c0_37 = arith.constant 0 : index
    %c0_38 = arith.constant 0 : index
    %47 = vector.load %arg14[%c0_37, %c0_38] : memref<64x128xf32, #tpu.memory_space<vmem>>, vector<32x128xf32>
    tpu.vector_store %arg14[%c0_37, %c0_38], %46 {strides = array<i32>} : memref<64x128xf32, #tpu.memory_space<vmem>>, vector<32x128xf32>,
    %c0_39 = arith.constant 0 : index
    %c0_40 = arith.constant 0 : index
    %c0_41 = arith.constant 0 : index
    %48 = vector.load %arg2[%c0_39, %c0_40, %c0_41] : memref<1x32x128xf32, #tpu.memory_space<vmem>>, vector<1x32x128xf32>
    %49 = vector.shape_cast %48 : vector<1x32x128xf32> to vector<32x128xf32>
    %c32 = arith.constant 32 : index
    %c0_42 = arith.constant 0 : index
    %50 = vector.load %arg14[%c32, %c0_42] : memref<64x128xf32, #tpu.memory_space<vmem>>, vector<32x128xf32>
    tpu.vector_store %arg14[%c32, %c0_42], %49 {strides = array<i32>} : memref<64x128xf32, #tpu.memory_space<vmem>>, vector<32x128xf32>,
    %c0_43 = arith.constant 0 : index
    %c0_44 = arith.constant 0 : index
    %c0_45 = arith.constant 0 : index
    %51 = vector.load %arg6[%c0_43, %c0_44, %c0_45] : memref<1x32x64xf32, #tpu.memory_space<vmem>>, vector<1x32x64xf32>
    %52 = vector.shape_cast %51 : vector<1x32x64xf32> to vector<32x64xf32>
    %c0_46 = arith.constant 0 : index
    %c0_47 = arith.constant 0 : index
    %53 = vector.load %arg14[%c0_46, %c0_47] : memref<64x128xf32, #tpu.memory_space<vmem>>, vector<64x128xf32>
    %cst_48 = arith.constant dense<0.000000e+00> : vector<32x128xf32>
    %54 = tpu.matmul %52, %53, %cst_48 {dimension_numbers = #tpu.dot_dimension_numbers<[1], [0], [0], [1], [0, 0, 1, 1], [], []>} : vector<32x64xf32>, vector<64x128xf32>, vector<32x128xf32> -> vector<32x128xf32>
    %c5 = arith.constant 5 : index
    %c0_49 = arith.constant 0 : index
    %c0_50 = arith.constant 0 : index
    %55 = vector.load %arg5[%c5, %c0_49, %c0_50] : memref<8x32x1xf32, #tpu.memory_space<vmem>>, vector<1x32x1xf32>
    %56 = vector.shape_cast %55 : vector<1x32x1xf32> to vector<32x1xf32>
    %57 = vector.broadcast %56 : vector<32x1xf32> to vector<32x128xf32>
    %58 = arith.addf %54, %57 : vector<32x128xf32>
    %cst_51 = arith.constant 0.000000e+00 : f32
    %59 = vector.broadcast %cst_51 : f32 to vector<32x128xf32>
    %60 = arith.maximumf %58, %59 : vector<32x128xf32>
    %c6 = arith.constant 6 : index
    %c0_52 = arith.constant 0 : index
    %c0_53 = arith.constant 0 : index
    %61 = vector.load %arg4[%c6, %c0_52, %c0_53] : memref<8x32x32xf32, #tpu.memory_space<vmem>>, vector<1x32x32xf32>
    %62 = vector.shape_cast %61 : vector<1x32x32xf32> to vector<32x32xf32>
    %cst_54 = arith.constant dense<0.000000e+00> : vector<32x128xf32>
    %63 = tpu.matmul %62, %60, %cst_54 {dimension_numbers = #tpu.dot_dimension_numbers<[1], [0], [0], [1], [0, 0, 1, 1], [], []>} : vector<32x32xf32>, vector<32x128xf32>, vector<32x128xf32> -> vector<32x128xf32>
    %c6_55 = arith.constant 6 : index
    %c0_56 = arith.constant 0 : index
    %c0_57 = arith.constant 0 : index
    %64 = vector.load %arg5[%c6_55, %c0_56, %c0_57] : memref<8x32x1xf32, #tpu.memory_space<vmem>>, vector<1x32x1xf32>
    %65 = vector.shape_cast %64 : vector<1x32x1xf32> to vector<32x1xf32>
    %66 = vector.broadcast %65 : vector<32x1xf32> to vector<32x128xf32>
    %67 = arith.addf %63, %66 : vector<32x128xf32>
    %cst_58 = arith.constant 0.000000e+00 : f32
    %68 = vector.broadcast %cst_58 : f32 to vector<32x128xf32>
    %69 = arith.maximumf %67, %68 : vector<32x128xf32>
    %c7 = arith.constant 7 : index
    %c0_59 = arith.constant 0 : index
    %c0_60 = arith.constant 0 : index
    %70 = vector.load %arg4[%c7, %c0_59, %c0_60] : memref<8x32x32xf32, #tpu.memory_space<vmem>>, vector<1x32x32xf32>
    %71 = vector.shape_cast %70 : vector<1x32x32xf32> to vector<32x32xf32>
    %cst_61 = arith.constant dense<0.000000e+00> : vector<32x128xf32>
    %72 = tpu.matmul %71, %69, %cst_61 {dimension_numbers = #tpu.dot_dimension_numbers<[1], [0], [0], [1], [0, 0, 1, 1], [], []>} : vector<32x32xf32>, vector<32x128xf32>, vector<32x128xf32> -> vector<32x128xf32>
    %c7_62 = arith.constant 7 : index
    %c0_63 = arith.constant 0 : index
    %c0_64 = arith.constant 0 : index
    %73 = vector.load %arg5[%c7_62, %c0_63, %c0_64] : memref<8x32x1xf32, #tpu.memory_space<vmem>>, vector<1x32x1xf32>
    %74 = vector.shape_cast %73 : vector<1x32x1xf32> to vector<32x1xf32>
    %75 = vector.broadcast %74 : vector<32x1xf32> to vector<32x128xf32>
    %76 = arith.addf %72, %75 : vector<32x128xf32>
    %cst_65 = arith.constant 0.000000e+00 : f32
    %77 = vector.broadcast %cst_65 : f32 to vector<32x128xf32>
    %78 = arith.maximumf %76, %77 : vector<32x128xf32>
    %c0_66 = arith.constant 0 : index
    %c0_67 = arith.constant 0 : index
    %79 = vector.load %arg7[%c0_66, %c0_67] : memref<40x32xf32, #tpu.memory_space<vmem>>, vector<40x32xf32>
    %cst_68 = arith.constant dense<0.000000e+00> : vector<40x128xf32>
    %80 = tpu.matmul %79, %78, %cst_68 {dimension_numbers = #tpu.dot_dimension_numbers<[1], [0], [0], [1], [0, 0, 1, 1], [], []>} : vector<40x32xf32>, vector<32x128xf32>, vector<40x128xf32> -> vector<40x128xf32>
    %c0_69 = arith.constant 0 : index
    %c0_70 = arith.constant 0 : index
    %81 = vector.load %arg8[%c0_69, %c0_70] : memref<40x1xf32, #tpu.memory_space<vmem>>, vector<40x1xf32>
    %82 = vector.broadcast %81 : vector<40x1xf32> to vector<40x128xf32>
    %83 = arith.addf %80, %82 : vector<40x128xf32>
    %84 = vector.extract_strided_slice %83 {offsets = [0, 0], sizes = [32, 128], strides = [1, 1]} : vector<40x128xf32> to vector<32x128xf32>
    %85 = vector.extract_strided_slice %83 {offsets = [32, 0], sizes = [8, 128], strides = [1, 1]} : vector<40x128xf32> to vector<8x128xf32>
    %c0_71 = arith.constant 0 : index
    %c0_72 = arith.constant 0 : index
    %c0_73 = arith.constant 0 : index
    %86 = vector.load %arg9[%c0_71, %c0_72, %c0_73] : memref<1x32x32xf32, #tpu.memory_space<vmem>>, vector<1x32x32xf32>
    %87 = vector.shape_cast %86 : vector<1x32x32xf32> to vector<32x32xf32>
    %cst_74 = arith.constant dense<0.000000e+00> : vector<32x128xf32>
    %88 = tpu.matmul %87, %84, %cst_74 {dimension_numbers = #tpu.dot_dimension_numbers<[1], [0], [0], [1], [0, 0, 1, 1], [], []>} : vector<32x32xf32>, vector<32x128xf32>, vector<32x128xf32> -> vector<32x128xf32>
    %c0_75 = arith.constant 0 : index
    %c0_76 = arith.constant 0 : index
    %c0_77 = arith.constant 0 : index
    %89 = vector.load %arg10[%c0_75, %c0_76, %c0_77] : memref<1x32x1xf32, #tpu.memory_space<vmem>>, vector<1x32x1xf32>
    %90 = vector.shape_cast %89 : vector<1x32x1xf32> to vector<32x1xf32>
    %91 = vector.broadcast %90 : vector<32x1xf32> to vector<32x128xf32>
    %92 = arith.addf %88, %91 : vector<32x128xf32>
    %c0_78 = arith.constant 0 : index
    %c0_79 = arith.constant 0 : index
    %c0_80 = arith.constant 0 : index
    %93 = vector.load %arg3[%c0_78, %c0_79, %c0_80] : memref<1x32x128xf32, #tpu.memory_space<vmem>>, vector<1x32x128xf32>
    %94 = vector.shape_cast %93 : vector<1x32x128xf32> to vector<32x128xf32>
    %95 = arith.addf %92, %94 : vector<32x128xf32>
    %cst_81 = arith.constant 0.000000e+00 : f32
    %96 = vector.broadcast %cst_81 : f32 to vector<32x128xf32>
    %97 = arith.maximumf %95, %96 : vector<32x128xf32>
    %c0_82 = arith.constant 0 : index
    %c0_83 = arith.constant 0 : index
    %98 = vector.load %arg11[%c0_82, %c0_83] : memref<8x32xf32, #tpu.memory_space<vmem>>, vector<8x32xf32>
    %cst_84 = arith.constant dense<0.000000e+00> : vector<8x128xf32>
    %99 = tpu.matmul %98, %97, %cst_84 {dimension_numbers = #tpu.dot_dimension_numbers<[1], [0], [0], [1], [0, 0, 1, 1], [], []>} : vector<8x32xf32>, vector<32x128xf32>, vector<8x128xf32> -> vector<8x128xf32>
    %c0_85 = arith.constant 0 : index
    %c0_86 = arith.constant 0 : index
    %100 = vector.load %arg12[%c0_85, %c0_86] : memref<8x1xf32, #tpu.memory_space<vmem>>, vector<8x1xf32>
    %101 = vector.broadcast %100 : vector<8x1xf32> to vector<8x128xf32>
    %102 = arith.addf %99, %101 : vector<8x128xf32>
    %103 = arith.addf %102, %85 : vector<8x128xf32>
    %c0_87 = arith.constant 0 : index
    %c0_88 = arith.constant 0 : index
    %c0_89 = arith.constant 0 : index
    %104 = vector.load %arg13[%c0_87, %c0_88, %c0_89] : memref<1x8x128xf32, #tpu.memory_space<vmem>>, vector<1x8x128xf32>
    %105 = vector.shape_cast %104 : vector<1x8x128xf32> to vector<8x128xf32>
    %106 = vector.shape_cast %103 : vector<8x128xf32> to vector<1x8x128xf32>
    tpu.vector_store %arg13[%c0_87, %c0_88, %c0_89], %106 {strides = array<i32>} : memref<1x8x128xf32, #tpu.memory_space<vmem>>, vector<1x8x128xf32>,
    return
  }
  func.func @transform_0(%arg0: i32, %arg1: i32) -> (i32, i32, i32) {
    %c0_i32 = arith.constant 0 : i32
    %c0_i32_0 = arith.constant 0 : i32
    return %arg0, %c0_i32, %arg1 : i32, i32, i32
  }
  func.func @transform_1(%arg0: i32, %arg1: i32) -> (i32, i32, i32) {
    %c0_i32 = arith.constant 0 : i32
    %c0_i32_0 = arith.constant 0 : i32
    return %arg0, %c0_i32, %arg1 : i32, i32, i32
  }
  func.func @transform_2(%arg0: i32, %arg1: i32) -> (i32, i32, i32) {
    %c0_i32 = arith.constant 0 : i32
    %c0_i32_0 = arith.constant 0 : i32
    %c0_i32_1 = arith.constant 0 : i32
    %c0_i32_2 = arith.constant 0 : i32
    return %c0_i32, %c0_i32_0, %c0_i32_1 : i32, i32, i32
  }
  func.func @transform_3(%arg0: i32, %arg1: i32) -> (i32, i32, i32) {
    %c0_i32 = arith.constant 0 : i32
    %c0_i32_0 = arith.constant 0 : i32
    %c0_i32_1 = arith.constant 0 : i32
    %c0_i32_2 = arith.constant 0 : i32
    return %c0_i32, %c0_i32_0, %c0_i32_1 : i32, i32, i32
  }
  func.func @transform_4(%arg0: i32, %arg1: i32) -> (i32, i32, i32) {
    %c0_i32 = arith.constant 0 : i32
    %c0_i32_0 = arith.constant 0 : i32
    %c0_i32_1 = arith.constant 0 : i32
    %c0_i32_2 = arith.constant 0 : i32
    return %c0_i32, %c0_i32_0, %c0_i32_1 : i32, i32, i32
  }
  func.func @transform_5(%arg0: i32, %arg1: i32) -> (i32, i32) {
    %c0_i32 = arith.constant 0 : i32
    %c0_i32_0 = arith.constant 0 : i32
    %c0_i32_1 = arith.constant 0 : i32
    return %c0_i32, %c0_i32_0 : i32, i32
  }
  func.func @transform_6(%arg0: i32, %arg1: i32) -> (i32, i32) {
    %c0_i32 = arith.constant 0 : i32
    %c0_i32_0 = arith.constant 0 : i32
    %c0_i32_1 = arith.constant 0 : i32
    return %c0_i32, %c0_i32_0 : i32, i32
  }
  func.func @transform_7(%arg0: i32, %arg1: i32) -> (i32, i32, i32) {
    %c0_i32 = arith.constant 0 : i32
    %c0_i32_0 = arith.constant 0 : i32
    %c0_i32_1 = arith.constant 0 : i32
    %c0_i32_2 = arith.constant 0 : i32
    return %c0_i32, %c0_i32_0, %c0_i32_1 : i32, i32, i32
  }
  func.func @transform_8(%arg0: i32, %arg1: i32) -> (i32, i32, i32) {
    %c0_i32 = arith.constant 0 : i32
    %c0_i32_0 = arith.constant 0 : i32
    %c0_i32_1 = arith.constant 0 : i32
    %c0_i32_2 = arith.constant 0 : i32
    return %c0_i32, %c0_i32_0, %c0_i32_1 : i32, i32, i32
  }
  func.func @transform_9(%arg0: i32, %arg1: i32) -> (i32, i32) {
    %c0_i32 = arith.constant 0 : i32
    %c0_i32_0 = arith.constant 0 : i32
    %c0_i32_1 = arith.constant 0 : i32
    return %c0_i32, %c0_i32_0 : i32, i32
  }
  func.func @transform_10(%arg0: i32, %arg1: i32) -> (i32, i32) {
    %c0_i32 = arith.constant 0 : i32
    %c0_i32_0 = arith.constant 0 : i32
    %c0_i32_1 = arith.constant 0 : i32
    return %c0_i32, %c0_i32_0 : i32, i32
  }
  func.func @transform_11(%arg0: i32, %arg1: i32) -> (i32, i32, i32) {
    %c0_i32 = arith.constant 0 : i32
    %c0_i32_0 = arith.constant 0 : i32
    return %arg0, %c0_i32, %arg1 : i32, i32, i32
  }
}

</mosaic_0001>

<llo_original>
// kernel: tpu_custom_call.1
$region0: #{tpu_custom_call.1}
  #allocation0 [shape = 'u32[]', space=smem, size = 0x4, offset = 0x4, fixed_abs, tag = 'smem constant byte address 0x4 - core index']
  #allocation1 [shape = 'u32[144,128]{1,0:T(1,128)}', space=vmem, size = 0x12000, scoped, tag = 'internal scratch']
  #allocation2 [shape = 'f32[64,128]{1,0:T(8,128)}', space=vmem, size = 0x8000, scoped, tag = 'scratch operand']
  %s0 = inlined_call_operand.vmem [shape: f32[1,32,128], index: 0, kind: input, shape index: {}]
  %s1 = inlined_call_operand.vmem [shape: f32[1,32,128], index: 1, kind: input, shape index: {}]
  %s2 = inlined_call_operand.vmem [shape: f32[8,32,32], index: 2, kind: input, shape index: {}]
  %s3 = inlined_call_operand.vmem [shape: f32[8,32,1], index: 3, kind: input, shape index: {}]
  %s4 = inlined_call_operand.vmem [shape: f32[1,32,64], index: 4, kind: input, shape index: {}]
  %s5 = inlined_call_operand.vmem [shape: f32[40,32], index: 5, kind: input, shape index: {}]
  %s6 = inlined_call_operand.vmem [shape: f32[40,1], index: 6, kind: input, shape index: {}]
  %s7 = inlined_call_operand.vmem [shape: f32[1,32,32], index: 7, kind: input, shape index: {}]
  %s8 = inlined_call_operand.vmem [shape: f32[1,32,1], index: 8, kind: input, shape index: {}]
  %s9 = inlined_call_operand.vmem [shape: f32[8,32], index: 9, kind: input, shape index: {}]
  %s10 = inlined_call_operand.vmem [shape: f32[8,1], index: 10, kind: input, shape index: {}]
  %s11 = inlined_call_operand.hbm [shape: f32[1,8,128], index: 11, kind: output, shape index: {}]
  %s12 = sld [smem:[#allocation0]]
  $region54: #{tpu_custom_call.1} parent=0
    _
  %s14 = ssub.s32 1, %s12
  %s15 = scalar_select 0, %s14, %s12
  $region1: #{tpu_custom_call.1} parent=0
    #allocation3 [shape = 'u8[4096]{0}', space=vmem, size = 0x1000, scoped, tag = 'output window, operand 0, single buffered']
    #allocation4 [shape = 's32[1]{0}', space=sflag, size = 0x4, scoped, tag = 'scoped memory for tpu_custom_call.1']
    %16 = vsyncpa [#allocation4], 0
    // Predicated region
    $region2: #{tpu_custom_call.1} parent=1 // pred_check
      _
    $region3: #{tpu_custom_call.1} parent=1 // pred_check_branch
      %18 = sbr.rel (0) target = $region5
    $region4: #{tpu_custom_call.1} parent=1 // pred_region
      _
    $region5: #{tpu_custom_call.1} parent=1 // pred_fallthru
      _
    // Predicated region
    $region6: #{tpu_custom_call.1} parent=1 // pred_check
      _
    $region7: #{tpu_custom_call.1} parent=1 // pred_check_branch
      %20 = sbr.rel (0) target = $region9
    $region8: #{tpu_custom_call.1} parent=1 // pred_region
      _
    $region9: #{tpu_custom_call.1} parent=1 // pred_fallthru
      _
    // Predicated region
    $region10: #{tpu_custom_call.1} parent=1 // pred_check
      _
    $region11: #{tpu_custom_call.1} parent=1 // pred_check_branch
      %22 = sbr.rel (0) target = $region13
    $region12: #{tpu_custom_call.1} parent=1 // pred_region
      _
    $region13: #{tpu_custom_call.1} parent=1 // pred_fallthru
      _
    // Predicated region
    $region14: #{tpu_custom_call.1} parent=1 // pred_check
      _
    $region15: #{tpu_custom_call.1} parent=1 // pred_check_branch
      %24 = sbr.rel (0) target = $region17
    $region16: #{tpu_custom_call.1} parent=1 // pred_region
      _
    $region17: #{tpu_custom_call.1} parent=1 // pred_fallthru
      _
    // Predicated region
    $region18: #{tpu_custom_call.1} parent=1 // pred_check
      _
    $region19: #{tpu_custom_call.1} parent=1 // pred_check_branch
      %26 = sbr.rel (0) target = $region21
    $region20: #{tpu_custom_call.1} parent=1 // pred_region
      _
    $region21: #{tpu_custom_call.1} parent=1 // pred_fallthru
      _
    // Predicated region
    $region22: #{tpu_custom_call.1} parent=1 // pred_check
      _
    $region23: #{tpu_custom_call.1} parent=1 // pred_check_branch
      %28 = sbr.rel (0) target = $region25
    $region24: #{tpu_custom_call.1} parent=1 // pred_region
      _
    $region25: #{tpu_custom_call.1} parent=1 // pred_fallthru
      _
    // Predicated region
    $region26: #{tpu_custom_call.1} parent=1 // pred_check
      _
    $region27: #{tpu_custom_call.1} parent=1 // pred_check_branch
      %30 = sbr.rel (0) target = $region29
    $region28: #{tpu_custom_call.1} parent=1 // pred_region
      _
    $region29: #{tpu_custom_call.1} parent=1 // pred_fallthru
      _
    // Predicated region
    $region30: #{tpu_custom_call.1} parent=1 // pred_check
      _
    $region31: #{tpu_custom_call.1} parent=1 // pred_check_branch
      %32 = sbr.rel (0) target = $region33
    $region32: #{tpu_custom_call.1} parent=1 // pred_region
      _
    $region33: #{tpu_custom_call.1} parent=1 // pred_fallthru
      _
    // Predicated region
    $region34: #{tpu_custom_call.1} parent=1 // pred_check
      _
    $region35: #{tpu_custom_call.1} parent=1 // pred_check_branch
      %34 = sbr.rel (0) target = $region37
    $region36: #{tpu_custom_call.1} parent=1 // pred_region
      _
    $region37: #{tpu_custom_call.1} parent=1 // pred_fallthru
      _
    // Predicated region
    $region38: #{tpu_custom_call.1} parent=1 // pred_check
      _
    $region39: #{tpu_custom_call.1} parent=1 // pred_check_branch
      %36 = sbr.rel (0) target = $region41
    $region40: #{tpu_custom_call.1} parent=1 // pred_region
      _
    $region41: #{tpu_custom_call.1} parent=1 // pred_fallthru
      _
    // Predicated region
    $region42: #{tpu_custom_call.1} parent=1 // pred_check
      _
    $region43: #{tpu_custom_call.1} parent=1 // pred_check_branch
      %38 = sbr.rel (0) target = $region45
    $region44: #{tpu_custom_call.1} parent=1 // pred_region
      _
    $region45: #{tpu_custom_call.1} parent=1 // pred_fallthru
      _
    %v39 = vld [vmem:[%s2] sm:$0xff]
    %v40 = vld [vmem:[%s2 + $0x8] sm:$0xff]
    %v41 = vld [vmem:[%s2 + $0x10] sm:$0xff]
    %v42 = vld [vmem:[%s2 + $0x18] sm:$0xff]
    %v43 = vld [vmem:[%s0] sm:$0xff]
    %v44 = vld [vmem:[%s0 + $0x8] sm:$0xff]
    %v45 = vld [vmem:[%s0 + $0x10] sm:$0xff]
    %v46 = vld [vmem:[%s0 + $0x18] sm:$0xff]
    %v47 = vld [vmem:[%s3] sm:$0xff]
    %v48 = vld [vmem:[%s3 + $0x8] sm:$0xff]
    %v49 = vld [vmem:[%s3 + $0x10] sm:$0xff]
    %v50 = vld [vmem:[%s3 + $0x18] sm:$0xff]
    %52 = vset.pattern.permute.xlu0 0
    %53 = vperm.xlu0 %52, %v47
    %v54 = vpop.permute.xlu0 %53
    %57 = vset.pattern.permute.xlu0 0
    %58 = vperm.xlu0 %57, %v48
    %v59 = vpop.permute.xlu0 %58
    %62 = vset.pattern.permute.xlu0 0
    %63 = vperm.xlu0 %62, %v49
    %v64 = vpop.permute.xlu0 %63
    %67 = vset.pattern.permute.xlu0 0
    %68 = vperm.xlu0 %67, %v50
    %v69 = vpop.permute.xlu0 %68
    %vm71 = vcmask 261120
    %v73 = vsel %vm71, %v39, 0
    %v76 = vsel %vm71, %v40, 0
    %v79 = vsel %vm71, %v41, 0
    %v82 = vsel %vm71, %v42, 0
    %84 = vmatprep.subr.mxu0 0.0
    %85 = vmatpush1.msra.mxu0 %v43
    %86 = vmatprep.subr.mxu0 0.0
    %87 = vmatpush1.msra.mxu0 %v44
    %88 = vmatprep.subr.mxu0 0.0
    %89 = vmatpush1.msra.mxu0 %v45
    %90 = vmatprep.subr.mxu0 0.0
    %91 = vmatpush1.msra.mxu0 %v46
    %92 = vmatprep.subr.mxu0 0.0
    %93 = vmatpush1.msra.mxu0 0.0
    %94 = vmatprep.subr.mxu0 0.0
    %95 = vmatpush1.msra.mxu0 0.0
    %96 = vmatprep.subr.mxu0 0.0
    %97 = vmatpush1.msra.mxu0 0.0
    %98 = vmatprep.subr.mxu0 0.0
    %99 = vmatpush1.msra.mxu0 0.0
    %100 = vmatprep.subr.mxu0 0.0
    %101 = vmatpush1.msra.mxu0 0.0
    %102 = vmatprep.subr.mxu0 0.0
    %103 = vmatpush1.msra.mxu0 0.0
    %104 = vmatprep.subr.mxu0 0.0
    %105 = vmatpush1.msra.mxu0 0.0
    %106 = vmatprep.subr.mxu0 0.0
    %107 = vmatpush1.msra.mxu0 0.0
    %108 = vmatprep.subr.mxu0 0.0
    %109 = vmatpush1.msra.mxu0 0.0
    %110 = vmatprep.subr.mxu0 0.0
    %111 = vmatpush1.msra.mxu0 0.0
    %112 = vmatprep.subr.mxu0 0.0
    %113 = vmatpush1.msra.mxu0 0.0
    %114 = vmatprep.subr.mxu0 0.0
    %115 = vmatpush1.msra.mxu0 0.0
    %116 = vmatprep.subr.mxu0 0.0
    %117 = vmatpush1.msra.mxu0 0.0
    %118 = vmatprep.subr.mxu0 0.0
    %119 = vmatpush1.msra.mxu0 0.0
    %120 = vmatprep.subr.mxu0 0.0
    %121 = vmatpush1.msra.mxu0 0.0
    %122 = vmatprep.subr.mxu0 0.0
    %123 = vmatpush1.msra.mxu0 0.0
    %124 = vmatprep.subr.mxu0 0.0
    %125 = vmatpush1.msra.mxu0 0.0
    %126 = vmatprep.subr.mxu0 0.0
    %127 = vmatpush1.msra.mxu0 0.0
    %128 = vmatprep.subr.mxu0 0.0
    %129 = vmatpush1.msra.mxu0 0.0
    %130 = vmatprep.subr.mxu0 0.0
    %131 = vmatpush1.msra.mxu0 0.0
    %132 = vmatprep.subr.mxu0 0.0
    %133 = vmatpush1.msra.mxu0 0.0
    %134 = vmatprep.subr.mxu0 0.0
    %135 = vmatpush1.msra.mxu0 0.0
    %136 = vmatprep.subr.mxu0 0.0
    %137 = vmatpush1.msra.mxu0 0.0
    %138 = vmatprep.subr.mxu0 0.0
    %139 = vmatpush1.msra.mxu0 0.0
    %140 = vmatprep.subr.mxu0 0.0
    %141 = vmatpush1.msra.mxu0 0.0
    %142 = vmatprep.subr.mxu0 0.0
    %143 = vmatpush1.msra.mxu0 0.0
    %144 = vmatprep.subr.mxu0 0.0
    %145 = vmatpush1.msra.mxu0 0.0
    %146 = vmatprep.subr.mxu0 0.0
    %147 = vmatpush1.msra.mxu0 0.0
    %148 = vmatprep.mubr.f32.mxu0 0.0
    %149 = vmatmul.mubr.f32.gmra.mrb[0].mxu0 %v73
    %v150 = vpop.f32.mrb[0].mxu0
    %v151 = vadd.f32 %v54, %v150
    %v152 = vpop.f32.mrb[0].mxu0
    %153 = vmatprep.mubr.f32.mxu0 0.0
    %154 = vmatmul.mubr.f32.gmra.mrb[0].mxu0 %v76
    %v155 = vpop.f32.mrb[0].mxu0
    %v156 = vadd.f32 %v59, %v155
    %v157 = vpop.f32.mrb[0].mxu0
    %158 = vmatprep.mubr.f32.mxu0 0.0
    %159 = vmatmul.mubr.f32.gmra.mrb[0].mxu0 %v79
    %v160 = vpop.f32.mrb[0].mxu0
    %v161 = vadd.f32 %v64, %v160
    %v162 = vpop.f32.mrb[0].mxu0
    %163 = vmatprep.mubr.f32.mxu0 0.0
    %164 = vmatmul.mubr.f32.gmra.mrb[0].mxu0 %v82
    %v165 = vpop.f32.mrb[0].mxu0
    %v166 = vadd.f32 %v69, %v165
    %v167 = vpop.f32.mrb[0].mxu0
    %168 = vdwg.mxu0
    %v169 = vmax.f32 %v151, 0.0
    %v170 = vmax.f32 %v156, 0.0
    %v171 = vmax.f32 %v161, 0.0
    %v172 = vmax.f32 %v166, 0.0
    %s173 = scalar_lea.vmem %s2, 32
    %v174 = vld [vmem:[%s173] sm:$0xff]
    %v175 = vld [vmem:[%s173 + $0x8] sm:$0xff]
    %v176 = vld [vmem:[%s173 + $0x10] sm:$0xff]
    %v177 = vld [vmem:[%s173 + $0x18] sm:$0xff]
    %s178 = scalar_lea.vmem %s3, 32
    %v179 = vld [vmem:[%s178] sm:$0xff]
    %v180 = vld [vmem:[%s178 + $0x8] sm:$0xff]
    %v181 = vld [vmem:[%s178 + $0x10] sm:$0xff]
    %v182 = vld [vmem:[%s178 + $0x18] sm:$0xff]
    %184 = vset.pattern.permute.xlu0 0
    %185 = vperm.xlu0 %184, %v179
    %v186 = vpop.permute.xlu0 %185
    %189 = vset.pattern.permute.xlu0 0
    %190 = vperm.xlu0 %189, %v180
    %v191 = vpop.permute.xlu0 %190
    %194 = vset.pattern.permute.xlu0 0
    %195 = vperm.xlu0 %194, %v181
    %v196 = vpop.permute.xlu0 %195
    %199 = vset.pattern.permute.xlu0 0
    %200 = vperm.xlu0 %199, %v182
    %v201 = vpop.permute.xlu0 %200
    %v204 = vsel %vm71, %v174, 0
    %v207 = vsel %vm71, %v175, 0
    %v210 = vsel %vm71, %v176, 0
    %v213 = vsel %vm71, %v177, 0
    %215 = vmatprep.subr.mxu0 0.0
    %216 = vmatpush1.msra.mxu0 %v169
    %217 = vmatprep.subr.mxu0 0.0
    %218 = vmatpush1.msra.mxu0 %v170
    %219 = vmatprep.subr.mxu0 0.0
    %220 = vmatpush1.msra.mxu0 %v171
    %221 = vmatprep.subr.mxu0 0.0
    %222 = vmatpush1.msra.mxu0 %v172
    %223 = vmatprep.subr.mxu0 0.0
    %224 = vmatpush1.msra.mxu0 0.0
    %225 = vmatprep.subr.mxu0 0.0
    %226 = vmatpush1.msra.mxu0 0.0
    %227 = vmatprep.subr.mxu0 0.0
    %228 = vmatpush1.msra.mxu0 0.0
    %229 = vmatprep.subr.mxu0 0.0
    %230 = vmatpush1.msra.mxu0 0.0
    %231 = vmatprep.subr.mxu0 0.0
    %232 = vmatpush1.msra.mxu0 0.0
    %233 = vmatprep.subr.mxu0 0.0
    %234 = vmatpush1.msra.mxu0 0.0
    %235 = vmatprep.subr.mxu0 0.0
    %236 = vmatpush1.msra.mxu0 0.0
    %237 = vmatprep.subr.mxu0 0.0
    %238 = vmatpush1.msra.mxu0 0.0
    %239 = vmatprep.subr.mxu0 0.0
    %240 = vmatpush1.msra.mxu0 0.0
    %241 = vmatprep.subr.mxu0 0.0
    %242 = vmatpush1.msra.mxu0 0.0
    %243 = vmatprep.subr.mxu0 0.0
    %244 = vmatpush1.msra.mxu0 0.0
    %245 = vmatprep.subr.mxu0 0.0
    %246 = vmatpush1.msra.mxu0 0.0
    %247 = vmatprep.subr.mxu0 0.0
    %248 = vmatpush1.msra.mxu0 0.0
    %249 = vmatprep.subr.mxu0 0.0
    %250 = vmatpush1.msra.mxu0 0.0
    %251 = vmatprep.subr.mxu0 0.0
    %252 = vmatpush1.msra.mxu0 0.0
    %253 = vmatprep.subr.mxu0 0.0
    %254 = vmatpush1.msra.mxu0 0.0
    %255 = vmatprep.subr.mxu0 0.0
    %256 = vmatpush1.msra.mxu0 0.0
    %257 = vmatprep.subr.mxu0 0.0
    %258 = vmatpush1.msra.mxu0 0.0
    %259 = vmatprep.subr.mxu0 0.0
    %260 = vmatpush1.msra.mxu0 0.0
    %261 = vmatprep.subr.mxu0 0.0
    %262 = vmatpush1.msra.mxu0 0.0
    %263 = vmatprep.subr.mxu0 0.0
    %264 = vmatpush1.msra.mxu0 0.0
    %265 = vmatprep.subr.mxu0 0.0
    %266 = vmatpush1.msra.mxu0 0.0
    %267 = vmatprep.subr.mxu0 0.0
    %268 = vmatpush1.msra.mxu0 0.0
    %269 = vmatprep.subr.mxu0 0.0
    %270 = vmatpush1.msra.mxu0 0.0
    %271 = vmatprep.subr.mxu0 0.0
    %272 = vmatpush1.msra.mxu0 0.0
    %273 = vmatprep.subr.mxu0 0.0
    %274 = vmatpush1.msra.mxu0 0.0
    %275 = vmatprep.subr.mxu0 0.0
    %276 = vmatpush1.msra.mxu0 0.0
    %277 = vmatprep.subr.mxu0 0.0
    %278 = vmatpush1.msra.mxu0 0.0
    %279 = vmatprep.mubr.f32.mxu0 0.0
    %280 = vmatmul.mubr.f32.gmra.mrb[0].mxu0 %v204
    %v281 = vpop.f32.mrb[0].mxu0
    %v282 = vadd.f32 %v186, %v281
    %v283 = vpop.f32.mrb[0].mxu0
    %284 = vmatprep.mubr.f32.mxu0 0.0
    %285 = vmatmul.mubr.f32.gmra.mrb[0].mxu0 %v207
    %v286 = vpop.f32.mrb[0].mxu0
    %v287 = vadd.f32 %v191, %v286
    %v288 = vpop.f32.mrb[0].mxu0
    %289 = vmatprep.mubr.f32.mxu0 0.0
    %290 = vmatmul.mubr.f32.gmra.mrb[0].mxu0 %v210
    %v291 = vpop.f32.mrb[0].mxu0
    %v292 = vadd.f32 %v196, %v291
    %v293 = vpop.f32.mrb[0].mxu0
    %294 = vmatprep.mubr.f32.mxu0 0.0
    %295 = vmatmul.mubr.f32.gmra.mrb[0].mxu0 %v213
    %v296 = vpop.f32.mrb[0].mxu0
    %v297 = vadd.f32 %v201, %v296
    %v298 = vpop.f32.mrb[0].mxu0
    %299 = vdwg.mxu0
    %v300 = vmax.f32 %v282, 0.0
    %v301 = vmax.f32 %v287, 0.0
    %v302 = vmax.f32 %v292, 0.0
    %v303 = vmax.f32 %v297, 0.0
    %s304 = scalar_lea.vmem %s2, 64
    %v305 = vld [vmem:[%s304] sm:$0xff]
    %v306 = vld [vmem:[%s304 + $0x8] sm:$0xff]
    %v307 = vld [vmem:[%s304 + $0x10] sm:$0xff]
    %v308 = vld [vmem:[%s304 + $0x18] sm:$0xff]
    %s309 = scalar_lea.vmem %s3, 64
    %v310 = vld [vmem:[%s309] sm:$0xff]
    %v311 = vld [vmem:[%s309 + $0x8] sm:$0xff]
    %v312 = vld [vmem:[%s309 + $0x10] sm:$0xff]
    %v313 = vld [vmem:[%s309 + $0x18] sm:$0xff]
    %315 = vset.pattern.permute.xlu0 0
    %316 = vperm.xlu0 %315, %v310
    %v317 = vpop.permute.xlu0 %316
    %320 = vset.pattern.permute.xlu0 0
    %321 = vperm.xlu0 %320, %v311
    %v322 = vpop.permute.xlu0 %321
    %325 = vset.pattern.permute.xlu0 0
    %326 = vperm.xlu0 %325, %v312
    %v327 = vpop.permute.xlu0 %326
    %330 = vset.pattern.permute.xlu0 0
    %331 = vperm.xlu0 %330, %v313
    %v332 = vpop.permute.xlu0 %331
    %v335 = vsel %vm71, %v305, 0
    %v338 = vsel %vm71, %v306, 0
    %v341 = vsel %vm71, %v307, 0
    %v344 = vsel %vm71, %v308, 0
    %346 = vmatprep.subr.mxu0 0.0
    %347 = vmatpush1.msra.mxu0 %v300
    %348 = vmatprep.subr.mxu0 0.0
    %349 = vmatpush1.msra.mxu0 %v301
    %350 = vmatprep.subr.mxu0 0.0
    %351 = vmatpush1.msra.mxu0 %v302
    %352 = vmatprep.subr.mxu0 0.0
    %353 = vmatpush1.msra.mxu0 %v303
    %354 = vmatprep.subr.mxu0 0.0
    %355 = vmatpush1.msra.mxu0 0.0
    %356 = vmatprep.subr.mxu0 0.0
    %357 = vmatpush1.msra.mxu0 0.0
    %358 = vmatprep.subr.mxu0 0.0
    %359 = vmatpush1.msra.mxu0 0.0
    %360 = vmatprep.subr.mxu0 0.0
    %361 = vmatpush1.msra.mxu0 0.0
    %362 = vmatprep.subr.mxu0 0.0
    %363 = vmatpush1.msra.mxu0 0.0
    %364 = vmatprep.subr.mxu0 0.0
    %365 = vmatpush1.msra.mxu0 0.0
    %366 = vmatprep.subr.mxu0 0.0
    %367 = vmatpush1.msra.mxu0 0.0
    %368 = vmatprep.subr.mxu0 0.0
    %369 = vmatpush1.msra.mxu0 0.0
    %370 = vmatprep.subr.mxu0 0.0
    %371 = vmatpush1.msra.mxu0 0.0
    %372 = vmatprep.subr.mxu0 0.0
    %373 = vmatpush1.msra.mxu0 0.0
    %374 = vmatprep.subr.mxu0 0.0
    %375 = vmatpush1.msra.mxu0 0.0
    %376 = vmatprep.subr.mxu0 0.0
    %377 = vmatpush1.msra.mxu0 0.0
    %378 = vmatprep.subr.mxu0 0.0
    %379 = vmatpush1.msra.mxu0 0.0
    %380 = vmatprep.subr.mxu0 0.0
    %381 = vmatpush1.msra.mxu0 0.0
    %382 = vmatprep.subr.mxu0 0.0
    %383 = vmatpush1.msra.mxu0 0.0
    %384 = vmatprep.subr.mxu0 0.0
    %385 = vmatpush1.msra.mxu0 0.0
    %386 = vmatprep.subr.mxu0 0.0
    %387 = vmatpush1.msra.mxu0 0.0
    %388 = vmatprep.subr.mxu0 0.0
    %389 = vmatpush1.msra.mxu0 0.0
    %390 = vmatprep.subr.mxu0 0.0
    %391 = vmatpush1.msra.mxu0 0.0
    %392 = vmatprep.subr.mxu0 0.0
    %393 = vmatpush1.msra.mxu0 0.0
    %394 = vmatprep.subr.mxu0 0.0
    %395 = vmatpush1.msra.mxu0 0.0
    %396 = vmatprep.subr.mxu0 0.0
    %397 = vmatpush1.msra.mxu0 0.0
    %398 = vmatprep.subr.mxu0 0.0
    %399 = vmatpush1.msra.mxu0 0.0
    %400 = vmatprep.subr.mxu0 0.0
    %401 = vmatpush1.msra.mxu0 0.0
    %402 = vmatprep.subr.mxu0 0.0
    %403 = vmatpush1.msra.mxu0 0.0
    %404 = vmatprep.subr.mxu0 0.0
    %405 = vmatpush1.msra.mxu0 0.0
    %406 = vmatprep.subr.mxu0 0.0
    %407 = vmatpush1.msra.mxu0 0.0
    %408 = vmatprep.subr.mxu0 0.0
    %409 = vmatpush1.msra.mxu0 0.0
    %410 = vmatprep.mubr.f32.mxu0 0.0
    %411 = vmatmul.mubr.f32.gmra.mrb[0].mxu0 %v335
    %v412 = vpop.f32.mrb[0].mxu0
    %v413 = vadd.f32 %v317, %v412
    %v414 = vpop.f32.mrb[0].mxu0
    %415 = vmatprep.mubr.f32.mxu0 0.0
    %416 = vmatmul.mubr.f32.gmra.mrb[0].mxu0 %v338
    %v417 = vpop.f32.mrb[0].mxu0
    %v418 = vadd.f32 %v322, %v417
    %v419 = vpop.f32.mrb[0].mxu0
    %420 = vmatprep.mubr.f32.mxu0 0.0
    %421 = vmatmul.mubr.f32.gmra.mrb[0].mxu0 %v341
    %v422 = vpop.f32.mrb[0].mxu0
    %v423 = vadd.f32 %v327, %v422
    %v424 = vpop.f32.mrb[0].mxu0
    %425 = vmatprep.mubr.f32.mxu0 0.0
    %426 = vmatmul.mubr.f32.gmra.mrb[0].mxu0 %v344
    %v427 = vpop.f32.mrb[0].mxu0
    %v428 = vadd.f32 %v332, %v427
    %v429 = vpop.f32.mrb[0].mxu0
    %430 = vdwg.mxu0
    %v431 = vmax.f32 %v413, 0.0
    %v432 = vmax.f32 %v418, 0.0
    %v433 = vmax.f32 %v423, 0.0
    %v434 = vmax.f32 %v428, 0.0
    %s435 = scalar_lea.vmem %s2, 96
    %v436 = vld [vmem:[%s435] sm:$0xff]
    %v437 = vld [vmem:[%s435 + $0x8] sm:$0xff]
    %v438 = vld [vmem:[%s435 + $0x10] sm:$0xff]
    %v439 = vld [vmem:[%s435 + $0x18] sm:$0xff]
    %s440 = scalar_lea.vmem %s3, 96
    %v441 = vld [vmem:[%s440] sm:$0xff]
    %v442 = vld [vmem:[%s440 + $0x8] sm:$0xff]
    %v443 = vld [vmem:[%s440 + $0x10] sm:$0xff]
    %v444 = vld [vmem:[%s440 + $0x18] sm:$0xff]
    %446 = vset.pattern.permute.xlu0 0
    %447 = vperm.xlu0 %446, %v441
    %v448 = vpop.permute.xlu0 %447
    %451 = vset.pattern.permute.xlu0 0
    %452 = vperm.xlu0 %451, %v442
    %v453 = vpop.permute.xlu0 %452
    %456 = vset.pattern.permute.xlu0 0
    %457 = vperm.xlu0 %456, %v443
    %v458 = vpop.permute.xlu0 %457
    %461 = vset.pattern.permute.xlu0 0
    %462 = vperm.xlu0 %461, %v444
    %v463 = vpop.permute.xlu0 %462
    %v466 = vsel %vm71, %v436, 0
    %v469 = vsel %vm71, %v437, 0
    %v472 = vsel %vm71, %v438, 0
    %v475 = vsel %vm71, %v439, 0
    %477 = vmatprep.subr.mxu0 0.0
    %478 = vmatpush1.msra.mxu0 %v431
    %479 = vmatprep.subr.mxu0 0.0
    %480 = vmatpush1.msra.mxu0 %v432
    %481 = vmatprep.subr.mxu0 0.0
    %482 = vmatpush1.msra.mxu0 %v433
    %483 = vmatprep.subr.mxu0 0.0
    %484 = vmatpush1.msra.mxu0 %v434
    %485 = vmatprep.subr.mxu0 0.0
    %486 = vmatpush1.msra.mxu0 0.0
    %487 = vmatprep.subr.mxu0 0.0
    %488 = vmatpush1.msra.mxu0 0.0
    %489 = vmatprep.subr.mxu0 0.0
    %490 = vmatpush1.msra.mxu0 0.0
    %491 = vmatprep.subr.mxu0 0.0
    %492 = vmatpush1.msra.mxu0 0.0
    %493 = vmatprep.subr.mxu0 0.0
    %494 = vmatpush1.msra.mxu0 0.0
    %495 = vmatprep.subr.mxu0 0.0
    %496 = vmatpush1.msra.mxu0 0.0
    %497 = vmatprep.subr.mxu0 0.0
    %498 = vmatpush1.msra.mxu0 0.0
    %499 = vmatprep.subr.mxu0 0.0
    %500 = vmatpush1.msra.mxu0 0.0
    %501 = vmatprep.subr.mxu0 0.0
    %502 = vmatpush1.msra.mxu0 0.0
    %503 = vmatprep.subr.mxu0 0.0
    %504 = vmatpush1.msra.mxu0 0.0
    %505 = vmatprep.subr.mxu0 0.0
    %506 = vmatpush1.msra.mxu0 0.0
    %507 = vmatprep.subr.mxu0 0.0
    %508 = vmatpush1.msra.mxu0 0.0
    %509 = vmatprep.subr.mxu0 0.0
    %510 = vmatpush1.msra.mxu0 0.0
    %511 = vmatprep.subr.mxu0 0.0
    %512 = vmatpush1.msra.mxu0 0.0
    %513 = vmatprep.subr.mxu0 0.0
    %514 = vmatpush1.msra.mxu0 0.0
    %515 = vmatprep.subr.mxu0 0.0
    %516 = vmatpush1.msra.mxu0 0.0
    %517 = vmatprep.subr.mxu0 0.0
    %518 = vmatpush1.msra.mxu0 0.0
    %519 = vmatprep.subr.mxu0 0.0
    %520 = vmatpush1.msra.mxu0 0.0
    %521 = vmatprep.subr.mxu0 0.0
    %522 = vmatpush1.msra.mxu0 0.0
    %523 = vmatprep.subr.mxu0 0.0
    %524 = vmatpush1.msra.mxu0 0.0
    %525 = vmatprep.subr.mxu0 0.0
    %526 = vmatpush1.msra.mxu0 0.0
    %527 = vmatprep.subr.mxu0 0.0
    %528 = vmatpush1.msra.mxu0 0.0
    %529 = vmatprep.subr.mxu0 0.0
    %530 = vmatpush1.msra.mxu0 0.0
    %531 = vmatprep.subr.mxu0 0.0
    %532 = vmatpush1.msra.mxu0 0.0
    %533 = vmatprep.subr.mxu0 0.0
    %534 = vmatpush1.msra.mxu0 0.0
    %535 = vmatprep.subr.mxu0 0.0
    %536 = vmatpush1.msra.mxu0 0.0
    %537 = vmatprep.subr.mxu0 0.0
    %538 = vmatpush1.msra.mxu0 0.0
    %539 = vmatprep.subr.mxu0 0.0
    %540 = vmatpush1.msra.mxu0 0.0
    %541 = vmatprep.mubr.f32.mxu0 0.0
    %542 = vmatmul.mubr.f32.gmra.mrb[0].mxu0 %v466
    %v543 = vpop.f32.mrb[0].mxu0
    %v544 = vadd.f32 %v448, %v543
    %v545 = vpop.f32.mrb[0].mxu0
    %546 = vmatprep.mubr.f32.mxu0 0.0
    %547 = vmatmul.mubr.f32.gmra.mrb[0].mxu0 %v469
    %v548 = vpop.f32.mrb[0].mxu0
    %v549 = vadd.f32 %v453, %v548
    %v550 = vpop.f32.mrb[0].mxu0
    %551 = vmatprep.mubr.f32.mxu0 0.0
    %552 = vmatmul.mubr.f32.gmra.mrb[0].mxu0 %v472
    %v553 = vpop.f32.mrb[0].mxu0
    %v554 = vadd.f32 %v458, %v553
    %v555 = vpop.f32.mrb[0].mxu0
    %556 = vmatprep.mubr.f32.mxu0 0.0
    %557 = vmatmul.mubr.f32.gmra.mrb[0].mxu0 %v475
    %v558 = vpop.f32.mrb[0].mxu0
    %v559 = vadd.f32 %v463, %v558
    %v560 = vpop.f32.mrb[0].mxu0
    %561 = vdwg.mxu0
    %v562 = vmax.f32 %v544, 0.0
    %v563 = vmax.f32 %v549, 0.0
    %v564 = vmax.f32 %v554, 0.0
    %v565 = vmax.f32 %v559, 0.0
    %s566 = scalar_lea.vmem %s2, 128
    %v567 = vld [vmem:[%s566] sm:$0xff]
    %v568 = vld [vmem:[%s566 + $0x8] sm:$0xff]
    %v569 = vld [vmem:[%s566 + $0x10] sm:$0xff]
    %v570 = vld [vmem:[%s566 + $0x18] sm:$0xff]
    %s571 = scalar_lea.vmem %s3, 128
    %v572 = vld [vmem:[%s571] sm:$0xff]
    %v573 = vld [vmem:[%s571 + $0x8] sm:$0xff]
    %v574 = vld [vmem:[%s571 + $0x10] sm:$0xff]
    %v575 = vld [vmem:[%s571 + $0x18] sm:$0xff]
    %577 = vset.pattern.permute.xlu0 0
    %578 = vperm.xlu0 %577, %v572
    %v579 = vpop.permute.xlu0 %578
    %582 = vset.pattern.permute.xlu0 0
    %583 = vperm.xlu0 %582, %v573
    %v584 = vpop.permute.xlu0 %583
    %587 = vset.pattern.permute.xlu0 0
    %588 = vperm.xlu0 %587, %v574
    %v589 = vpop.permute.xlu0 %588
    %592 = vset.pattern.permute.xlu0 0
    %593 = vperm.xlu0 %592, %v575
    %v594 = vpop.permute.xlu0 %593
    %v597 = vsel %vm71, %v567, 0
    %v600 = vsel %vm71, %v568, 0
    %v603 = vsel %vm71, %v569, 0
    %v606 = vsel %vm71, %v570, 0
    %608 = vmatprep.subr.mxu0 0.0
    %609 = vmatpush1.msra.mxu0 %v562
    %610 = vmatprep.subr.mxu0 0.0
    %611 = vmatpush1.msra.mxu0 %v563
    %612 = vmatprep.subr.mxu0 0.0
    %613 = vmatpush1.msra.mxu0 %v564
    %614 = vmatprep.subr.mxu0 0.0
    %615 = vmatpush1.msra.mxu0 %v565
    %616 = vmatprep.subr.mxu0 0.0
    %617 = vmatpush1.msra.mxu0 0.0
    %618 = vmatprep.subr.mxu0 0.0
    %619 = vmatpush1.msra.mxu0 0.0
    %620 = vmatprep.subr.mxu0 0.0
    %621 = vmatpush1.msra.mxu0 0.0
    %622 = vmatprep.subr.mxu0 0.0
    %623 = vmatpush1.msra.mxu0 0.0
    %624 = vmatprep.subr.mxu0 0.0
    %625 = vmatpush1.msra.mxu0 0.0
    %626 = vmatprep.subr.mxu0 0.0
    %627 = vmatpush1.msra.mxu0 0.0
    %628 = vmatprep.subr.mxu0 0.0
    %629 = vmatpush1.msra.mxu0 0.0
    %630 = vmatprep.subr.mxu0 0.0
    %631 = vmatpush1.msra.mxu0 0.0
    %632 = vmatprep.subr.mxu0 0.0
    %633 = vmatpush1.msra.mxu0 0.0
    %634 = vmatprep.subr.mxu0 0.0
    %635 = vmatpush1.msra.mxu0 0.0
    %636 = vmatprep.subr.mxu0 0.0
    %637 = vmatpush1.msra.mxu0 0.0
    %638 = vmatprep.subr.mxu0 0.0
    %639 = vmatpush1.msra.mxu0 0.0
    %640 = vmatprep.subr.mxu0 0.0
    %641 = vmatpush1.msra.mxu0 0.0
    %642 = vmatprep.subr.mxu0 0.0
    %643 = vmatpush1.msra.mxu0 0.0
    %644 = vmatprep.subr.mxu0 0.0
    %645 = vmatpush1.msra.mxu0 0.0
    %646 = vmatprep.subr.mxu0 0.0
    %647 = vmatpush1.msra.mxu0 0.0
    %648 = vmatprep.subr.mxu0 0.0
    %649 = vmatpush1.msra.mxu0 0.0
    %650 = vmatprep.subr.mxu0 0.0
    %651 = vmatpush1.msra.mxu0 0.0
    %652 = vmatprep.subr.mxu0 0.0
    %653 = vmatpush1.msra.mxu0 0.0
    %654 = vmatprep.subr.mxu0 0.0
    %655 = vmatpush1.msra.mxu0 0.0
    %656 = vmatprep.subr.mxu0 0.0
    %657 = vmatpush1.msra.mxu0 0.0
    %658 = vmatprep.subr.mxu0 0.0
    %659 = vmatpush1.msra.mxu0 0.0
    %660 = vmatprep.subr.mxu0 0.0
    %661 = vmatpush1.msra.mxu0 0.0
    %662 = vmatprep.subr.mxu0 0.0
    %663 = vmatpush1.msra.mxu0 0.0
    %664 = vmatprep.subr.mxu0 0.0
    %665 = vmatpush1.msra.mxu0 0.0
    %666 = vmatprep.subr.mxu0 0.0
    %667 = vmatpush1.msra.mxu0 0.0
    %668 = vmatprep.subr.mxu0 0.0
    %669 = vmatpush1.msra.mxu0 0.0
    %670 = vmatprep.subr.mxu0 0.0
    %671 = vmatpush1.msra.mxu0 0.0
    %672 = vmatprep.mubr.f32.mxu0 0.0
    %673 = vmatmul.mubr.f32.gmra.mrb[0].mxu0 %v597
    %v674 = vpop.f32.mrb[0].mxu0
    %v675 = vadd.f32 %v579, %v674
    %v676 = vpop.f32.mrb[0].mxu0
    %677 = vmatprep.mubr.f32.mxu0 0.0
    %678 = vmatmul.mubr.f32.gmra.mrb[0].mxu0 %v600
    %v679 = vpop.f32.mrb[0].mxu0
    %v680 = vadd.f32 %v584, %v679
    %v681 = vpop.f32.mrb[0].mxu0
    %682 = vmatprep.mubr.f32.mxu0 0.0
    %683 = vmatmul.mubr.f32.gmra.mrb[0].mxu0 %v603
    %v684 = vpop.f32.mrb[0].mxu0
    %v685 = vadd.f32 %v589, %v684
    %v686 = vpop.f32.mrb[0].mxu0
    %687 = vmatprep.mubr.f32.mxu0 0.0
    %688 = vmatmul.mubr.f32.gmra.mrb[0].mxu0 %v606
    %v689 = vpop.f32.mrb[0].mxu0
    %v690 = vadd.f32 %v594, %v689
    %v691 = vpop.f32.mrb[0].mxu0
    %692 = vdwg.mxu0
    %v693 = vmax.f32 %v675, 0.0
    %v694 = vmax.f32 %v680, 0.0
    %v695 = vmax.f32 %v685, 0.0
    %v696 = vmax.f32 %v690, 0.0
    %697 = vst [vmem:[#allocation2] sm:$0xff] %v693
    %698 = vst [vmem:[#allocation2 + $0x8] sm:$0xff] %v694
    %699 = vst [vmem:[#allocation2 + $0x10] sm:$0xff] %v695
    %700 = vst [vmem:[#allocation2 + $0x18] sm:$0xff] %v696
    %v701 = vld [vmem:[%s0] sm:$0xff]
    %v702 = vld [vmem:[%s0 + $0x8] sm:$0xff]
    %v703 = vld [vmem:[%s0 + $0x10] sm:$0xff]
    %v704 = vld [vmem:[%s0 + $0x18] sm:$0xff]
    %705 = vst [vmem:[#allocation2 + $0x20] sm:$0xff] %v701
    %706 = vst [vmem:[#allocation2 + $0x28] sm:$0xff] %v702
    %707 = vst [vmem:[#allocation2 + $0x30] sm:$0xff] %v703
    %708 = vst [vmem:[#allocation2 + $0x38] sm:$0xff] %v704
    %v709 = vld [vmem:[%s4] sm:$0xff]
    %v710 = vld [vmem:[%s4 + $0x8] sm:$0xff]
    %v711 = vld [vmem:[%s4 + $0x10] sm:$0xff]
    %v712 = vld [vmem:[%s4 + $0x18] sm:$0xff]
    %v713 = vld [vmem:[#allocation2] sm:$0xff]
    %v714 = vld [vmem:[#allocation2 + $0x8] sm:$0xff]
    %v715 = vld [vmem:[#allocation2 + $0x10] sm:$0xff]
    %v716 = vld [vmem:[#allocation2 + $0x18] sm:$0xff]
    %v717 = vld [vmem:[#allocation2 + $0x20] sm:$0xff]
    %v718 = vld [vmem:[#allocation2 + $0x28] sm:$0xff]
    %v719 = vld [vmem:[#allocation2 + $0x30] sm:$0xff]
    %v720 = vld [vmem:[#allocation2 + $0x38] sm:$0xff]
    %s721 = scalar_lea.vmem %s3, 160
    %v722 = vld [vmem:[%s721] sm:$0xff]
    %v723 = vld [vmem:[%s721 + $0x8] sm:$0xff]
    %v724 = vld [vmem:[%s721 + $0x10] sm:$0xff]
    %v725 = vld [vmem:[%s721 + $0x18] sm:$0xff]
    %727 = vset.pattern.permute.xlu0 0
    %728 = vperm.xlu0 %727, %v722
    %v729 = vpop.permute.xlu0 %728
    %732 = vset.pattern.permute.xlu0 0
    %733 = vperm.xlu0 %732, %v723
    %v734 = vpop.permute.xlu0 %733
    %737 = vset.pattern.permute.xlu0 0
    %738 = vperm.xlu0 %737, %v724
    %v739 = vpop.permute.xlu0 %738
    %742 = vset.pattern.permute.xlu0 0
    %743 = vperm.xlu0 %742, %v725
    %v744 = vpop.permute.xlu0 %743
    %vm746 = vcmask 523264
    %v748 = vsel %vm746, %v709, 0
    %v751 = vsel %vm746, %v710, 0
    %v754 = vsel %vm746, %v711, 0
    %v757 = vsel %vm746, %v712, 0
    %759 = vmatprep.subr.mxu0 0.0
    %760 = vmatpush1.msra.mxu0 %v713
    %761 = vmatprep.subr.mxu0 0.0
    %762 = vmatpush1.msra.mxu0 %v714
    %763 = vmatprep.subr.mxu0 0.0
    %764 = vmatpush1.msra.mxu0 %v715
    %765 = vmatprep.subr.mxu0 0.0
    %766 = vmatpush1.msra.mxu0 %v716
    %767 = vmatprep.subr.mxu0 0.0
    %768 = vmatpush1.msra.mxu0 %v717
    %769 = vmatprep.subr.mxu0 0.0
    %770 = vmatpush1.msra.mxu0 %v718
    %771 = vmatprep.subr.mxu0 0.0
    %772 = vmatpush1.msra.mxu0 %v719
    %773 = vmatprep.subr.mxu0 0.0
    %774 = vmatpush1.msra.mxu0 %v720
    %775 = vmatprep.subr.mxu0 0.0
    %776 = vmatpush1.msra.mxu0 0.0
    %777 = vmatprep.subr.mxu0 0.0
    %778 = vmatpush1.msra.mxu0 0.0
    %779 = vmatprep.subr.mxu0 0.0
    %780 = vmatpush1.msra.mxu0 0.0
    %781 = vmatprep.subr.mxu0 0.0
    %782 = vmatpush1.msra.mxu0 0.0
    %783 = vmatprep.subr.mxu0 0.0
    %784 = vmatpush1.msra.mxu0 0.0
    %785 = vmatprep.subr.mxu0 0.0
    %786 = vmatpush1.msra.mxu0 0.0
    %787 = vmatprep.subr.mxu0 0.0
    %788 = vmatpush1.msra.mxu0 0.0
    %789 = vmatprep.subr.mxu0 0.0
    %790 = vmatpush1.msra.mxu0 0.0
    %791 = vmatprep.subr.mxu0 0.0
    %792 = vmatpush1.msra.mxu0 0.0
    %793 = vmatprep.subr.mxu0 0.0
    %794 = vmatpush1.msra.mxu0 0.0
    %795 = vmatprep.subr.mxu0 0.0
    %796 = vmatpush1.msra.mxu0 0.0
    %797 = vmatprep.subr.mxu0 0.0
    %798 = vmatpush1.msra.mxu0 0.0
    %799 = vmatprep.subr.mxu0 0.0
    %800 = vmatpush1.msra.mxu0 0.0
    %801 = vmatprep.subr.mxu0 0.0
    %802 = vmatpush1.msra.mxu0 0.0
    %803 = vmatprep.subr.mxu0 0.0
    %804 = vmatpush1.msra.mxu0 0.0
    %805 = vmatprep.subr.mxu0 0.0
    %806 = vmatpush1.msra.mxu0 0.0
    %807 = vmatprep.subr.mxu0 0.0
    %808 = vmatpush1.msra.mxu0 0.0
    %809 = vmatprep.subr.mxu0 0.0
    %810 = vmatpush1.msra.mxu0 0.0
    %811 = vmatprep.subr.mxu0 0.0
    %812 = vmatpush1.msra.mxu0 0.0
    %813 = vmatprep.subr.mxu0 0.0
    %814 = vmatpush1.msra.mxu0 0.0
    %815 = vmatprep.subr.mxu0 0.0
    %816 = vmatpush1.msra.mxu0 0.0
    %817 = vmatprep.subr.mxu0 0.0
    %818 = vmatpush1.msra.mxu0 0.0
    %819 = vmatprep.subr.mxu0 0.0
    %820 = vmatpush1.msra.mxu0 0.0
    %821 = vmatprep.subr.mxu0 0.0
    %822 = vmatpush1.msra.mxu0 0.0
    %823 = vmatprep.mubr.f32.mxu0 0.0
    %824 = vmatmul.mubr.f32.gmra.mrb[0].mxu0 %v748
    %v825 = vpop.f32.mrb[0].mxu0
    %v826 = vadd.f32 %v729, %v825
    %v827 = vpop.f32.mrb[0].mxu0
    %828 = vmatprep.mubr.f32.mxu0 0.0
    %829 = vmatmul.mubr.f32.gmra.mrb[0].mxu0 %v751
    %v830 = vpop.f32.mrb[0].mxu0
    %v831 = vadd.f32 %v734, %v830
    %v832 = vpop.f32.mrb[0].mxu0
    %833 = vmatprep.mubr.f32.mxu0 0.0
    %834 = vmatmul.mubr.f32.gmra.mrb[0].mxu0 %v754
    %v835 = vpop.f32.mrb[0].mxu0
    %v836 = vadd.f32 %v739, %v835
    %v837 = vpop.f32.mrb[0].mxu0
    %838 = vmatprep.mubr.f32.mxu0 0.0
    %839 = vmatmul.mubr.f32.gmra.mrb[0].mxu0 %v757
    %v840 = vpop.f32.mrb[0].mxu0
    %v841 = vadd.f32 %v744, %v840
    %v842 = vpop.f32.mrb[0].mxu0
    %843 = vdwg.mxu0
    %v844 = vmax.f32 %v826, 0.0
    %v845 = vmax.f32 %v831, 0.0
    %v846 = vmax.f32 %v836, 0.0
    %v847 = vmax.f32 %v841, 0.0
    %s848 = scalar_lea.vmem %s2, 192
    %v849 = vld [vmem:[%s848] sm:$0xff]
    %v850 = vld [vmem:[%s848 + $0x8] sm:$0xff]
    %v851 = vld [vmem:[%s848 + $0x10] sm:$0xff]
    %v852 = vld [vmem:[%s848 + $0x18] sm:$0xff]
    %s853 = scalar_lea.vmem %s3, 192
    %v854 = vld [vmem:[%s853] sm:$0xff]
    %v855 = vld [vmem:[%s853 + $0x8] sm:$0xff]
    %v856 = vld [vmem:[%s853 + $0x10] sm:$0xff]
    %v857 = vld [vmem:[%s853 + $0x18] sm:$0xff]
    %859 = vset.pattern.permute.xlu0 0
    %860 = vperm.xlu0 %859, %v854
    %v861 = vpop.permute.xlu0 %860
    %864 = vset.pattern.permute.xlu0 0
    %865 = vperm.xlu0 %864, %v855
    %v866 = vpop.permute.xlu0 %865
    %869 = vset.pattern.permute.xlu0 0
    %870 = vperm.xlu0 %869, %v856
    %v871 = vpop.permute.xlu0 %870
    %874 = vset.pattern.permute.xlu0 0
    %875 = vperm.xlu0 %874, %v857
    %v876 = vpop.permute.xlu0 %875
    %v879 = vsel %vm71, %v849, 0
    %v882 = vsel %vm71, %v850, 0
    %v885 = vsel %vm71, %v851, 0
    %v888 = vsel %vm71, %v852, 0
    %890 = vmatprep.subr.mxu0 0.0
    %891 = vmatpush1.msra.mxu0 %v844
    %892 = vmatprep.subr.mxu0 0.0
    %893 = vmatpush1.msra.mxu0 %v845
    %894 = vmatprep.subr.mxu0 0.0
    %895 = vmatpush1.msra.mxu0 %v846
    %896 = vmatprep.subr.mxu0 0.0
    %897 = vmatpush1.msra.mxu0 %v847
    %898 = vmatprep.subr.mxu0 0.0
    %899 = vmatpush1.msra.mxu0 0.0
    %900 = vmatprep.subr.mxu0 0.0
    %901 = vmatpush1.msra.mxu0 0.0
    %902 = vmatprep.subr.mxu0 0.0
    %903 = vmatpush1.msra.mxu0 0.0
    %904 = vmatprep.subr.mxu0 0.0
    %905 = vmatpush1.msra.mxu0 0.0
    %906 = vmatprep.subr.mxu0 0.0
    %907 = vmatpush1.msra.mxu0 0.0
    %908 = vmatprep.subr.mxu0 0.0
    %909 = vmatpush1.msra.mxu0 0.0
    %910 = vmatprep.subr.mxu0 0.0
    %911 = vmatpush1.msra.mxu0 0.0
    %912 = vmatprep.subr.mxu0 0.0
    %913 = vmatpush1.msra.mxu0 0.0
    %914 = vmatprep.subr.mxu0 0.0
    %915 = vmatpush1.msra.mxu0 0.0
    %916 = vmatprep.subr.mxu0 0.0
    %917 = vmatpush1.msra.mxu0 0.0
    %918 = vmatprep.subr.mxu0 0.0
    %919 = vmatpush1.msra.mxu0 0.0
    %920 = vmatprep.subr.mxu0 0.0
    %921 = vmatpush1.msra.mxu0 0.0
    %922 = vmatprep.subr.mxu0 0.0
    %923 = vmatpush1.msra.mxu0 0.0
    %924 = vmatprep.subr.mxu0 0.0
    %925 = vmatpush1.msra.mxu0 0.0
    %926 = vmatprep.subr.mxu0 0.0
    %927 = vmatpush1.msra.mxu0 0.0
    %928 = vmatprep.subr.mxu0 0.0
    %929 = vmatpush1.msra.mxu0 0.0
    %930 = vmatprep.subr.mxu0 0.0
    %931 = vmatpush1.msra.mxu0 0.0
    %932 = vmatprep.subr.mxu0 0.0
    %933 = vmatpush1.msra.mxu0 0.0
    %934 = vmatprep.subr.mxu0 0.0
    %935 = vmatpush1.msra.mxu0 0.0
    %936 = vmatprep.subr.mxu0 0.0
    %937 = vmatpush1.msra.mxu0 0.0
    %938 = vmatprep.subr.mxu0 0.0
    %939 = vmatpush1.msra.mxu0 0.0
    %940 = vmatprep.subr.mxu0 0.0
    %941 = vmatpush1.msra.mxu0 0.0
    %942 = vmatprep.subr.mxu0 0.0
    %943 = vmatpush1.msra.mxu0 0.0
    %944 = vmatprep.subr.mxu0 0.0
    %945 = vmatpush1.msra.mxu0 0.0
    %946 = vmatprep.subr.mxu0 0.0
    %947 = vmatpush1.msra.mxu0 0.0
    %948 = vmatprep.subr.mxu0 0.0
    %949 = vmatpush1.msra.mxu0 0.0
    %950 = vmatprep.subr.mxu0 0.0
    %951 = vmatpush1.msra.mxu0 0.0
    %952 = vmatprep.subr.mxu0 0.0
    %953 = vmatpush1.msra.mxu0 0.0
    %954 = vmatprep.mubr.f32.mxu0 0.0
    %955 = vmatmul.mubr.f32.gmra.mrb[0].mxu0 %v879
    %v956 = vpop.f32.mrb[0].mxu0
    %v957 = vadd.f32 %v861, %v956
    %v958 = vpop.f32.mrb[0].mxu0
    %959 = vmatprep.mubr.f32.mxu0 0.0
    %960 = vmatmul.mubr.f32.gmra.mrb[0].mxu0 %v882
    %v961 = vpop.f32.mrb[0].mxu0
    %v962 = vadd.f32 %v866, %v961
    %v963 = vpop.f32.mrb[0].mxu0
    %964 = vmatprep.mubr.f32.mxu0 0.0
    %965 = vmatmul.mubr.f32.gmra.mrb[0].mxu0 %v885
    %v966 = vpop.f32.mrb[0].mxu0
    %v967 = vadd.f32 %v871, %v966
    %v968 = vpop.f32.mrb[0].mxu0
    %969 = vmatprep.mubr.f32.mxu0 0.0
    %970 = vmatmul.mubr.f32.gmra.mrb[0].mxu0 %v888
    %v971 = vpop.f32.mrb[0].mxu0
    %v972 = vadd.f32 %v876, %v971
    %v973 = vpop.f32.mrb[0].mxu0
    %974 = vdwg.mxu0
    %v975 = vmax.f32 %v957, 0.0
    %v976 = vmax.f32 %v962, 0.0
    %v977 = vmax.f32 %v967, 0.0
    %v978 = vmax.f32 %v972, 0.0
    %s979 = scalar_lea.vmem %s2, 224
    %v980 = vld [vmem:[%s979] sm:$0xff]
    %v981 = vld [vmem:[%s979 + $0x8] sm:$0xff]
    %v982 = vld [vmem:[%s979 + $0x10] sm:$0xff]
    %v983 = vld [vmem:[%s979 + $0x18] sm:$0xff]
    %s984 = scalar_lea.vmem %s3, 224
    %v985 = vld [vmem:[%s984] sm:$0xff]
    %v986 = vld [vmem:[%s984 + $0x8] sm:$0xff]
    %v987 = vld [vmem:[%s984 + $0x10] sm:$0xff]
    %v988 = vld [vmem:[%s984 + $0x18] sm:$0xff]
    %990 = vset.pattern.permute.xlu0 0
    %991 = vperm.xlu0 %990, %v985
    %v992 = vpop.permute.xlu0 %991
    %995 = vset.pattern.permute.xlu0 0
    %996 = vperm.xlu0 %995, %v986
    %v997 = vpop.permute.xlu0 %996
    %1000 = vset.pattern.permute.xlu0 0
    %1001 = vperm.xlu0 %1000, %v987
    %v1002 = vpop.permute.xlu0 %1001
    %1005 = vset.pattern.permute.xlu0 0
    %1006 = vperm.xlu0 %1005, %v988
    %v1007 = vpop.permute.xlu0 %1006
    %v1010 = vsel %vm71, %v980, 0
    %v1013 = vsel %vm71, %v981, 0
    %v1016 = vsel %vm71, %v982, 0
    %v1019 = vsel %vm71, %v983, 0
    %1021 = vmatprep.subr.mxu0 0.0
    %1022 = vmatpush1.msra.mxu0 %v975
    %1023 = vmatprep.subr.mxu0 0.0
    %1024 = vmatpush1.msra.mxu0 %v976
    %1025 = vmatprep.subr.mxu0 0.0
    %1026 = vmatpush1.msra.mxu0 %v977
    %1027 = vmatprep.subr.mxu0 0.0
    %1028 = vmatpush1.msra.mxu0 %v978
    %1029 = vmatprep.subr.mxu0 0.0
    %1030 = vmatpush1.msra.mxu0 0.0
    %1031 = vmatprep.subr.mxu0 0.0
    %1032 = vmatpush1.msra.mxu0 0.0
    %1033 = vmatprep.subr.mxu0 0.0
    %1034 = vmatpush1.msra.mxu0 0.0
    %1035 = vmatprep.subr.mxu0 0.0
    %1036 = vmatpush1.msra.mxu0 0.0
    %1037 = vmatprep.subr.mxu0 0.0
    %1038 = vmatpush1.msra.mxu0 0.0
    %1039 = vmatprep.subr.mxu0 0.0
    %1040 = vmatpush1.msra.mxu0 0.0
    %1041 = vmatprep.subr.mxu0 0.0
    %1042 = vmatpush1.msra.mxu0 0.0
    %1043 = vmatprep.subr.mxu0 0.0
    %1044 = vmatpush1.msra.mxu0 0.0
    %1045 = vmatprep.subr.mxu0 0.0
    %1046 = vmatpush1.msra.mxu0 0.0
    %1047 = vmatprep.subr.mxu0 0.0
    %1048 = vmatpush1.msra.mxu0 0.0
    %1049 = vmatprep.subr.mxu0 0.0
    %1050 = vmatpush1.msra.mxu0 0.0
    %1051 = vmatprep.subr.mxu0 0.0
    %1052 = vmatpush1.msra.mxu0 0.0
    %1053 = vmatprep.subr.mxu0 0.0
    %1054 = vmatpush1.msra.mxu0 0.0
    %1055 = vmatprep.subr.mxu0 0.0
    %1056 = vmatpush1.msra.mxu0 0.0
    %1057 = vmatprep.subr.mxu0 0.0
    %1058 = vmatpush1.msra.mxu0 0.0
    %1059 = vmatprep.subr.mxu0 0.0
    %1060 = vmatpush1.msra.mxu0 0.0
    %1061 = vmatprep.subr.mxu0 0.0
    %1062 = vmatpush1.msra.mxu0 0.0
    %1063 = vmatprep.subr.mxu0 0.0
    %1064 = vmatpush1.msra.mxu0 0.0
    %1065 = vmatprep.subr.mxu0 0.0
    %1066 = vmatpush1.msra.mxu0 0.0
    %1067 = vmatprep.subr.mxu0 0.0
    %1068 = vmatpush1.msra.mxu0 0.0
    %1069 = vmatprep.subr.mxu0 0.0
    %1070 = vmatpush1.msra.mxu0 0.0
    %1071 = vmatprep.subr.mxu0 0.0
    %1072 = vmatpush1.msra.mxu0 0.0
    %1073 = vmatprep.subr.mxu0 0.0
    %1074 = vmatpush1.msra.mxu0 0.0
    %1075 = vmatprep.subr.mxu0 0.0
    %1076 = vmatpush1.msra.mxu0 0.0
    %1077 = vmatprep.subr.mxu0 0.0
    %1078 = vmatpush1.msra.mxu0 0.0
    %1079 = vmatprep.subr.mxu0 0.0
    %1080 = vmatpush1.msra.mxu0 0.0
    %1081 = vmatprep.subr.mxu0 0.0
    %1082 = vmatpush1.msra.mxu0 0.0
    %1083 = vmatprep.subr.mxu0 0.0
    %1084 = vmatpush1.msra.mxu0 0.0
    %1085 = vmatprep.mubr.f32.mxu0 0.0
    %1086 = vmatmul.mubr.f32.gmra.mrb[0].mxu0 %v1010
    %v1087 = vpop.f32.mrb[0].mxu0
    %v1088 = vadd.f32 %v992, %v1087
    %v1089 = vpop.f32.mrb[0].mxu0
    %1090 = vmatprep.mubr.f32.mxu0 0.0
    %1091 = vmatmul.mubr.f32.gmra.mrb[0].mxu0 %v1013
    %v1092 = vpop.f32.mrb[0].mxu0
    %v1093 = vadd.f32 %v997, %v1092
    %v1094 = vpop.f32.mrb[0].mxu0
    %1095 = vmatprep.mubr.f32.mxu0 0.0
    %1096 = vmatmul.mubr.f32.gmra.mrb[0].mxu0 %v1016
    %v1097 = vpop.f32.mrb[0].mxu0
    %v1098 = vadd.f32 %v1002, %v1097
    %v1099 = vpop.f32.mrb[0].mxu0
    %1100 = vmatprep.mubr.f32.mxu0 0.0
    %1101 = vmatmul.mubr.f32.gmra.mrb[0].mxu0 %v1019
    %v1102 = vpop.f32.mrb[0].mxu0
    %v1103 = vadd.f32 %v1007, %v1102
    %v1104 = vpop.f32.mrb[0].mxu0
    %1105 = vdwg.mxu0
    %v1106 = vmax.f32 %v1088, 0.0
    %v1107 = vmax.f32 %v1093, 0.0
    %v1108 = vmax.f32 %v1098, 0.0
    %v1109 = vmax.f32 %v1103, 0.0
    %v1110 = vld [vmem:[%s5] sm:$0xff]
    %v1111 = vld [vmem:[%s5 + $0x8] sm:$0xff]
    %v1112 = vld [vmem:[%s5 + $0x10] sm:$0xff]
    %v1113 = vld [vmem:[%s5 + $0x18] sm:$0xff]
    %v1114 = vld [vmem:[%s5 + $0x20] sm:$0xff]
    %v1115 = vld [vmem:[%s6] sm:$0xff]
    %v1116 = vld [vmem:[%s6 + $0x8] sm:$0xff]
    %v1117 = vld [vmem:[%s6 + $0x10] sm:$0xff]
    %v1118 = vld [vmem:[%s6 + $0x18] sm:$0xff]
    %v1119 = vld [vmem:[%s6 + $0x20] sm:$0xff]
    %1121 = vset.pattern.permute.xlu0 0
    %1122 = vperm.xlu0 %1121, %v1115
    %v1123 = vpop.permute.xlu0 %1122
    %1126 = vset.pattern.permute.xlu0 0
    %1127 = vperm.xlu0 %1126, %v1116
    %v1128 = vpop.permute.xlu0 %1127
    %1131 = vset.pattern.permute.xlu0 0
    %1132 = vperm.xlu0 %1131, %v1117
    %v1133 = vpop.permute.xlu0 %1132
    %1136 = vset.pattern.permute.xlu0 0
    %1137 = vperm.xlu0 %1136, %v1118
    %v1138 = vpop.permute.xlu0 %1137
    %1141 = vset.pattern.permute.xlu0 0
    %1142 = vperm.xlu0 %1141, %v1119
    %v1143 = vpop.permute.xlu0 %1142
    %v1146 = vsel %vm71, %v1110, 0
    %v1149 = vsel %vm71, %v1111, 0
    %v1152 = vsel %vm71, %v1112, 0
    %v1155 = vsel %vm71, %v1113, 0
    %v1158 = vsel %vm71, %v1114, 0
    %1160 = vmatprep.subr.mxu0 0.0
    %1161 = vmatpush1.msra.mxu0 %v1106
    %1162 = vmatprep.subr.mxu0 0.0
    %1163 = vmatpush1.msra.mxu0 %v1107
    %1164 = vmatprep.subr.mxu0 0.0
    %1165 = vmatpush1.msra.mxu0 %v1108
    %1166 = vmatprep.subr.mxu0 0.0
    %1167 = vmatpush1.msra.mxu0 %v1109
    %1168 = vmatprep.subr.mxu0 0.0
    %1169 = vmatpush1.msra.mxu0 0.0
    %1170 = vmatprep.subr.mxu0 0.0
    %1171 = vmatpush1.msra.mxu0 0.0
    %1172 = vmatprep.subr.mxu0 0.0
    %1173 = vmatpush1.msra.mxu0 0.0
    %1174 = vmatprep.subr.mxu0 0.0
    %1175 = vmatpush1.msra.mxu0 0.0
    %1176 = vmatprep.subr.mxu0 0.0
    %1177 = vmatpush1.msra.mxu0 0.0
    %1178 = vmatprep.subr.mxu0 0.0
    %1179 = vmatpush1.msra.mxu0 0.0
    %1180 = vmatprep.subr.mxu0 0.0
    %1181 = vmatpush1.msra.mxu0 0.0
    %1182 = vmatprep.subr.mxu0 0.0
    %1183 = vmatpush1.msra.mxu0 0.0
    %1184 = vmatprep.subr.mxu0 0.0
    %1185 = vmatpush1.msra.mxu0 0.0
    %1186 = vmatprep.subr.mxu0 0.0
    %1187 = vmatpush1.msra.mxu0 0.0
    %1188 = vmatprep.subr.mxu0 0.0
    %1189 = vmatpush1.msra.mxu0 0.0
    %1190 = vmatprep.subr.mxu0 0.0
    %1191 = vmatpush1.msra.mxu0 0.0
    %1192 = vmatprep.subr.mxu0 0.0
    %1193 = vmatpush1.msra.mxu0 0.0
    %1194 = vmatprep.subr.mxu0 0.0
    %1195 = vmatpush1.msra.mxu0 0.0
    %1196 = vmatprep.subr.mxu0 0.0
    %1197 = vmatpush1.msra.mxu0 0.0
    %1198 = vmatprep.subr.mxu0 0.0
    %1199 = vmatpush1.msra.mxu0 0.0
    %1200 = vmatprep.subr.mxu0 0.0
    %1201 = vmatpush1.msra.mxu0 0.0
    %1202 = vmatprep.subr.mxu0 0.0
    %1203 = vmatpush1.msra.mxu0 0.0
    %1204 = vmatprep.subr.mxu0 0.0
    %1205 = vmatpush1.msra.mxu0 0.0
    %1206 = vmatprep.subr.mxu0 0.0
    %1207 = vmatpush1.msra.mxu0 0.0
    %1208 = vmatprep.subr.mxu0 0.0
    %1209 = vmatpush1.msra.mxu0 0.0
    %1210 = vmatprep.subr.mxu0 0.0
    %1211 = vmatpush1.msra.mxu0 0.0
    %1212 = vmatprep.subr.mxu0 0.0
    %1213 = vmatpush1.msra.mxu0 0.0
    %1214 = vmatprep.subr.mxu0 0.0
    %1215 = vmatpush1.msra.mxu0 0.0
    %1216 = vmatprep.subr.mxu0 0.0
    %1217 = vmatpush1.msra.mxu0 0.0
    %1218 = vmatprep.subr.mxu0 0.0
    %1219 = vmatpush1.msra.mxu0 0.0
    %1220 = vmatprep.subr.mxu0 0.0
    %1221 = vmatpush1.msra.mxu0 0.0
    %1222 = vmatprep.subr.mxu0 0.0
    %1223 = vmatpush1.msra.mxu0 0.0
    %1224 = vmatprep.mubr.f32.mxu0 0.0
    %1225 = vmatmul.mubr.f32.gmra.mrb[0].mxu0 %v1146
    %v1226 = vpop.f32.mrb[0].mxu0
    %v1227 = vadd.f32 %v1123, %v1226
    %v1228 = vpop.f32.mrb[0].mxu0
    %1229 = vmatprep.mubr.f32.mxu0 0.0
    %1230 = vmatmul.mubr.f32.gmra.mrb[0].mxu0 %v1149
    %v1231 = vpop.f32.mrb[0].mxu0
    %v1232 = vadd.f32 %v1128, %v1231
    %v1233 = vpop.f32.mrb[0].mxu0
    %1234 = vmatprep.mubr.f32.mxu0 0.0
    %1235 = vmatmul.mubr.f32.gmra.mrb[0].mxu0 %v1152
    %v1236 = vpop.f32.mrb[0].mxu0
    %v1237 = vadd.f32 %v1133, %v1236
    %v1238 = vpop.f32.mrb[0].mxu0
    %1239 = vmatprep.mubr.f32.mxu0 0.0
    %1240 = vmatmul.mubr.f32.gmra.mrb[0].mxu0 %v1155
    %v1241 = vpop.f32.mrb[0].mxu0
    %v1242 = vadd.f32 %v1138, %v1241
    %v1243 = vpop.f32.mrb[0].mxu0
    %1244 = vmatprep.mubr.f32.mxu0 0.0
    %1245 = vmatmul.mubr.f32.gmra.mrb[0].mxu0 %v1158
    %v1246 = vpop.f32.mrb[0].mxu0
    %v1247 = vadd.f32 %v1143, %v1246
    %v1248 = vpop.f32.mrb[0].mxu0
    %1249 = vdwg.mxu0
    %v1250 = vld [vmem:[%s7] sm:$0xff]
    %v1251 = vld [vmem:[%s7 + $0x8] sm:$0xff]
    %v1252 = vld [vmem:[%s7 + $0x10] sm:$0xff]
    %v1253 = vld [vmem:[%s7 + $0x18] sm:$0xff]
    %v1254 = vld [vmem:[%s8] sm:$0xff]
    %v1255 = vld [vmem:[%s8 + $0x8] sm:$0xff]
    %v1256 = vld [vmem:[%s8 + $0x10] sm:$0xff]
    %v1257 = vld [vmem:[%s8 + $0x18] sm:$0xff]
    %1259 = vset.pattern.permute.xlu0 0
    %1260 = vperm.xlu0 %1259, %v1254
    %v1261 = vpop.permute.xlu0 %1260
    %1264 = vset.pattern.permute.xlu0 0
    %1265 = vperm.xlu0 %1264, %v1255
    %v1266 = vpop.permute.xlu0 %1265
    %1269 = vset.pattern.permute.xlu0 0
    %1270 = vperm.xlu0 %1269, %v1256
    %v1271 = vpop.permute.xlu0 %1270
    %1274 = vset.pattern.permute.xlu0 0
    %1275 = vperm.xlu0 %1274, %v1257
    %v1276 = vpop.permute.xlu0 %1275
    %v1279 = vsel %vm71, %v1250, 0
    %v1282 = vsel %vm71, %v1251, 0
    %v1285 = vsel %vm71, %v1252, 0
    %v1288 = vsel %vm71, %v1253, 0
    %1290 = vmatprep.subr.mxu0 0.0
    %1291 = vmatpush1.msra.mxu0 %v1227
    %1292 = vmatprep.subr.mxu0 0.0
    %1293 = vmatpush1.msra.mxu0 %v1232
    %1294 = vmatprep.subr.mxu0 0.0
    %1295 = vmatpush1.msra.mxu0 %v1237
    %1296 = vmatprep.subr.mxu0 0.0
    %1297 = vmatpush1.msra.mxu0 %v1242
    %1298 = vmatprep.subr.mxu0 0.0
    %1299 = vmatpush1.msra.mxu0 0.0
    %1300 = vmatprep.subr.mxu0 0.0
    %1301 = vmatpush1.msra.mxu0 0.0
    %1302 = vmatprep.subr.mxu0 0.0
    %1303 = vmatpush1.msra.mxu0 0.0
    %1304 = vmatprep.subr.mxu0 0.0
    %1305 = vmatpush1.msra.mxu0 0.0
    %1306 = vmatprep.subr.mxu0 0.0
    %1307 = vmatpush1.msra.mxu0 0.0
    %1308 = vmatprep.subr.mxu0 0.0
    %1309 = vmatpush1.msra.mxu0 0.0
    %1310 = vmatprep.subr.mxu0 0.0
    %1311 = vmatpush1.msra.mxu0 0.0
    %1312 = vmatprep.subr.mxu0 0.0
    %1313 = vmatpush1.msra.mxu0 0.0
    %1314 = vmatprep.subr.mxu0 0.0
    %1315 = vmatpush1.msra.mxu0 0.0
    %1316 = vmatprep.subr.mxu0 0.0
    %1317 = vmatpush1.msra.mxu0 0.0
    %1318 = vmatprep.subr.mxu0 0.0
    %1319 = vmatpush1.msra.mxu0 0.0
    %1320 = vmatprep.subr.mxu0 0.0
    %1321 = vmatpush1.msra.mxu0 0.0
    %1322 = vmatprep.subr.mxu0 0.0
    %1323 = vmatpush1.msra.mxu0 0.0
    %1324 = vmatprep.subr.mxu0 0.0
    %1325 = vmatpush1.msra.mxu0 0.0
    %1326 = vmatprep.subr.mxu0 0.0
    %1327 = vmatpush1.msra.mxu0 0.0
    %1328 = vmatprep.subr.mxu0 0.0
    %1329 = vmatpush1.msra.mxu0 0.0
    %1330 = vmatprep.subr.mxu0 0.0
    %1331 = vmatpush1.msra.mxu0 0.0
    %1332 = vmatprep.subr.mxu0 0.0
    %1333 = vmatpush1.msra.mxu0 0.0
    %1334 = vmatprep.subr.mxu0 0.0
    %1335 = vmatpush1.msra.mxu0 0.0
    %1336 = vmatprep.subr.mxu0 0.0
    %1337 = vmatpush1.msra.mxu0 0.0
    %1338 = vmatprep.subr.mxu0 0.0
    %1339 = vmatpush1.msra.mxu0 0.0
    %1340 = vmatprep.subr.mxu0 0.0
    %1341 = vmatpush1.msra.mxu0 0.0
    %1342 = vmatprep.subr.mxu0 0.0
    %1343 = vmatpush1.msra.mxu0 0.0
    %1344 = vmatprep.subr.mxu0 0.0
    %1345 = vmatpush1.msra.mxu0 0.0
    %1346 = vmatprep.subr.mxu0 0.0
    %1347 = vmatpush1.msra.mxu0 0.0
    %1348 = vmatprep.subr.mxu0 0.0
    %1349 = vmatpush1.msra.mxu0 0.0
    %1350 = vmatprep.subr.mxu0 0.0
    %1351 = vmatpush1.msra.mxu0 0.0
    %1352 = vmatprep.subr.mxu0 0.0
    %1353 = vmatpush1.msra.mxu0 0.0
    %1354 = vmatprep.mubr.f32.mxu0 0.0
    %1355 = vmatmul.mubr.f32.gmra.mrb[0].mxu0 %v1279
    %v1356 = vpop.f32.mrb[0].mxu0
    %v1357 = vadd.f32 %v1261, %v1356
    %v1358 = vpop.f32.mrb[0].mxu0
    %1359 = vmatprep.mubr.f32.mxu0 0.0
    %1360 = vmatmul.mubr.f32.gmra.mrb[0].mxu0 %v1282
    %v1361 = vpop.f32.mrb[0].mxu0
    %v1362 = vadd.f32 %v1266, %v1361
    %v1363 = vpop.f32.mrb[0].mxu0
    %1364 = vmatprep.mubr.f32.mxu0 0.0
    %1365 = vmatmul.mubr.f32.gmra.mrb[0].mxu0 %v1285
    %v1366 = vpop.f32.mrb[0].mxu0
    %v1367 = vadd.f32 %v1271, %v1366
    %v1368 = vpop.f32.mrb[0].mxu0
    %1369 = vmatprep.mubr.f32.mxu0 0.0
    %1370 = vmatmul.mubr.f32.gmra.mrb[0].mxu0 %v1288
    %v1371 = vpop.f32.mrb[0].mxu0
    %v1372 = vadd.f32 %v1276, %v1371
    %v1373 = vpop.f32.mrb[0].mxu0
    %1374 = vdwg.mxu0
    %v1375 = vld [vmem:[%s1] sm:$0xff]
    %v1376 = vld [vmem:[%s1 + $0x8] sm:$0xff]
    %v1377 = vld [vmem:[%s1 + $0x10] sm:$0xff]
    %v1378 = vld [vmem:[%s1 + $0x18] sm:$0xff]
    %v1379 = vadd.f32 %v1357, %v1375
    %v1380 = vadd.f32 %v1362, %v1376
    %v1381 = vadd.f32 %v1367, %v1377
    %v1382 = vadd.f32 %v1372, %v1378
    %v1383 = vmax.f32 %v1379, 0.0
    %v1384 = vmax.f32 %v1380, 0.0
    %v1385 = vmax.f32 %v1381, 0.0
    %v1386 = vmax.f32 %v1382, 0.0
    %v1387 = vld [vmem:[%s9] sm:$0xff]
    %v1388 = vld [vmem:[%s10] sm:$0xff]
    %1390 = vset.pattern.permute.xlu0 0
    %1391 = vperm.xlu0 %1390, %v1388
    %v1392 = vpop.permute.xlu0 %1391
    %v1395 = vsel %vm71, %v1387, 0
    %1397 = vmatprep.subr.mxu0 0.0
    %1398 = vmatpush1.msra.mxu0 %v1383
    %1399 = vmatprep.subr.mxu0 0.0
    %1400 = vmatpush1.msra.mxu0 %v1384
    %1401 = vmatprep.subr.mxu0 0.0
    %1402 = vmatpush1.msra.mxu0 %v1385
    %1403 = vmatprep.subr.mxu0 0.0
    %1404 = vmatpush1.msra.mxu0 %v1386
    %1405 = vmatprep.subr.mxu0 0.0
    %1406 = vmatpush1.msra.mxu0 0.0
    %1407 = vmatprep.subr.mxu0 0.0
    %1408 = vmatpush1.msra.mxu0 0.0
    %1409 = vmatprep.subr.mxu0 0.0
    %1410 = vmatpush1.msra.mxu0 0.0
    %1411 = vmatprep.subr.mxu0 0.0
    %1412 = vmatpush1.msra.mxu0 0.0
    %1413 = vmatprep.subr.mxu0 0.0
    %1414 = vmatpush1.msra.mxu0 0.0
    %1415 = vmatprep.subr.mxu0 0.0
    %1416 = vmatpush1.msra.mxu0 0.0
    %1417 = vmatprep.subr.mxu0 0.0
    %1418 = vmatpush1.msra.mxu0 0.0
    %1419 = vmatprep.subr.mxu0 0.0
    %1420 = vmatpush1.msra.mxu0 0.0
    %1421 = vmatprep.subr.mxu0 0.0
    %1422 = vmatpush1.msra.mxu0 0.0
    %1423 = vmatprep.subr.mxu0 0.0
    %1424 = vmatpush1.msra.mxu0 0.0
    %1425 = vmatprep.subr.mxu0 0.0
    %1426 = vmatpush1.msra.mxu0 0.0
    %1427 = vmatprep.subr.mxu0 0.0
    %1428 = vmatpush1.msra.mxu0 0.0
    %1429 = vmatprep.subr.mxu0 0.0
    %1430 = vmatpush1.msra.mxu0 0.0
    %1431 = vmatprep.subr.mxu0 0.0
    %1432 = vmatpush1.msra.mxu0 0.0
    %1433 = vmatprep.subr.mxu0 0.0
    %1434 = vmatpush1.msra.mxu0 0.0
    %1435 = vmatprep.subr.mxu0 0.0
    %1436 = vmatpush1.msra.mxu0 0.0
    %1437 = vmatprep.subr.mxu0 0.0
    %1438 = vmatpush1.msra.mxu0 0.0
    %1439 = vmatprep.subr.mxu0 0.0
    %1440 = vmatpush1.msra.mxu0 0.0
    %1441 = vmatprep.subr.mxu0 0.0
    %1442 = vmatpush1.msra.mxu0 0.0
    %1443 = vmatprep.subr.mxu0 0.0
    %1444 = vmatpush1.msra.mxu0 0.0
    %1445 = vmatprep.subr.mxu0 0.0
    %1446 = vmatpush1.msra.mxu0 0.0
    %1447 = vmatprep.subr.mxu0 0.0
    %1448 = vmatpush1.msra.mxu0 0.0
    %1449 = vmatprep.subr.mxu0 0.0
    %1450 = vmatpush1.msra.mxu0 0.0
    %1451 = vmatprep.subr.mxu0 0.0
    %1452 = vmatpush1.msra.mxu0 0.0
    %1453 = vmatprep.subr.mxu0 0.0
    %1454 = vmatpush1.msra.mxu0 0.0
    %1455 = vmatprep.subr.mxu0 0.0
    %1456 = vmatpush1.msra.mxu0 0.0
    %1457 = vmatprep.subr.mxu0 0.0
    %1458 = vmatpush1.msra.mxu0 0.0
    %1459 = vmatprep.subr.mxu0 0.0
    %1460 = vmatpush1.msra.mxu0 0.0
    %1461 = vmatprep.mubr.f32.mxu0 0.0
    %1462 = vmatmul.mubr.f32.gmra.mrb[0].mxu0 %v1395
    %v1463 = vpop.f32.mrb[0].mxu0
    %v1464 = vadd.f32 %v1392, %v1463
    %v1465 = vpop.f32.mrb[0].mxu0
    %1466 = vdwg.mxu0
    %v1467 = vadd.f32 %v1464, %v1247
    %1468 = vst [vmem:[#allocation3] sm:$0xff] %v1467
    // Predicated region
    $region46: #{tpu_custom_call.1} parent=1 // pred_check
      _
    $region47: #{tpu_custom_call.1} parent=1 // pred_check_branch
      %1470 = sbr.rel (0) target = $region49
    $region48: #{tpu_custom_call.1} parent=1 // pred_region
      %s1472 = ssub.s32 128, 128
      %1473 = vsyncadd [#allocation4], %s1472
      %s1475 = sshll.u32 [#allocation3], 4
      %s1476 = int_to_ptr.vmem [resolvable:$true] %s1475
      %1478 = dma.vmem_to_hbm [thread:$0]  %s1476, 128, %s11, [#allocation4]
    $region49: #{tpu_custom_call.1} parent=1 // pred_fallthru
      _
    // Predicated region
    $region50: #{tpu_custom_call.1} parent=1 // pred_check
      _
    $region51: #{tpu_custom_call.1} parent=1 // pred_check_branch
      %1480 = sbr.rel (0) target = $region53
    $region52: #{tpu_custom_call.1} parent=1 // pred_region
      %1481 = dma.done [#allocation4], 128
    $region53: #{tpu_custom_call.1} parent=1 // pred_fallthru
      _
    %1482 = vsyncpa [#allocation4], 1

</llo_original>
